<compile_context>
chip_gen: v6e
topology: v6e:2x2x1
jax: 0.10.0
libtpu: 0.0.40
codegen_flags: <defaults>
</compile_context>

<pallas_src>
import math

import jax
import jax.numpy as jnp
from jax.experimental import pallas as pl
from jax.experimental.pallas import tpu as pltpu


def _round_up(x, m):
    return ((x + m - 1) // m) * m


def ngcf_conv_kernel(adj_ref, hsrc_ref, xdst_ref, w_ref, out_ref,
                     hself_acc, deg_acc):
    """Grid = (dst-row tiles, K tiles). K is the reduction axis (last, arbitrary)."""
    k = pl.program_id(1)
    f_in = hsrc_ref.shape[-1]

    @pl.when(k == 0)
    def _init():
        hself_acc[...] = jnp.zeros_like(hself_acc)
        deg_acc[...] = jnp.zeros_like(deg_acc)

    # Widen the narrow-dtype adjacency tile on the VPU (0/1 values are exact).
    adj = adj_ref[...].astype(jnp.float32)                       # (TM, TK)

    # copy_u + sum  ->  partial h_self = adj_tile @ h_src_tile  (MXU, f32 acc)
    hself_acc[...] += jnp.dot(adj, hsrc_ref[...],
                              preferred_element_type=jnp.float32)

    # In-degree row-sum folded into the K loop (rides the XLU slot).
    deg_acc[...] += jnp.sum(adj, axis=1, keepdims=True)          # (TM, 1)

    @pl.when(k == pl.num_programs(1) - 1)
    def _finalize():
        h_self = hself_acc[...]                                  # (TM, F_in)
        # message = src['h'] * dst['h'] summed over in-edges == h_self * x_dst
        h_inter = h_self * xdst_ref[...]
        # Packed weight buffer: rows [0, F_in) = W_self, [F_in, 2*F_in) = W_inter.
        rst = (jnp.dot(h_self, w_ref[0:f_in, :],
                       preferred_element_type=jnp.float32)
               + jnp.dot(h_inter, w_ref[f_in:2 * f_in, :],
                         preferred_element_type=jnp.float32))    # (TM, F_out_pad)
        norm_in = jax.lax.rsqrt(jnp.maximum(deg_acc[...], 1.0))  # clamp(min=1)**-0.5
        # TODO(synk): fuse an activation here if the module is built with one
        # (default is None).
        out_ref[...] = (rst * norm_in).astype(out_ref.dtype)     # lane-dense store


def ngcf_conv(adj, feature, weight_self, weight_interaction, *,
              tm=128, tk=128, adj_dtype=jnp.bfloat16, activation=None):
    n = feature.shape[0]
    f_in = feature.shape[1]
    f_out = weight_self.shape[1]
    assert tm % 8 == 0 and tk % 128 == 0, "tm must be 8-aligned, tk 128-aligned"

    # ---- hoisted out-degree normalization (column sum of adj) --------------
    adj_f32 = adj.astype(jnp.float32)
    deg_out = jnp.clip(jnp.sum(adj_f32, axis=0), 1.0, None)
    h_src = feature.astype(jnp.float32) * jax.lax.rsqrt(deg_out)[:, None]
    x_dst = feature.astype(jnp.float32)

    # ---- pack + lane-pad weights to >=128 output lanes ----------------------
    f_out_p = max(_round_up(f_out, 128), 128)
    w_packed = jnp.concatenate(
        [weight_self.astype(jnp.float32),
         weight_interaction.astype(jnp.float32)], axis=0)        # (2*F_in, F_out)
    w_packed = jnp.pad(w_packed, ((0, 0), (0, f_out_p - f_out)))

    # ---- pad node dim so both grid axes divide evenly ------------------------
    n_p = _round_up(n, math.lcm(tm, tk))
    pad_n = n_p - n
    adj_p = jnp.pad(adj.astype(adj_dtype), ((0, pad_n), (0, pad_n)))
    h_src_p = jnp.pad(h_src, ((0, pad_n), (0, 0)))
    x_dst_p = jnp.pad(x_dst, ((0, pad_n), (0, 0)))
    # Padded rows/cols are all-zero: they add nothing to sums, and padded
    # output rows are sliced away below (clamp(min=1) keeps norms finite).

    grid = (n_p // tm, n_p // tk)
    adj_itemsize = jnp.dtype(adj_dtype).itemsize

    # VMEM budget: double-buffered inputs/outputs + accumulator scratch.
    per_step = (tm * tk * adj_itemsize + tk * f_in * 4 + tm * f_in * 4
                + 2 * f_in * f_out_p * 4 + tm * f_out_p * 4)
    scratch_bytes = tm * f_in * 4 + tm * 4
    vmem_limit = int(min(64 * 1024 * 1024,
                         max(8 * 1024 * 1024, 3 * per_step + scratch_bytes)))

    cost = pl.CostEstimate(
        flops=int(2 * n_p * n_p * f_in + 2 * n_p * 2 * f_in * f_out_p
                  + 4 * n_p * f_in),
        transcendentals=int(n_p),
        bytes_accessed=int(n_p * n_p * adj_itemsize
                           + grid[0] * n_p * f_in * 4     # h_src restreamed per row-tile
                           + n_p * f_in * 4
                           + 2 * f_in * f_out_p * 4
                           + n_p * f_out_p * 4),
    )

    out_p = pl.pallas_call(
        ngcf_conv_kernel,
        out_shape=jax.ShapeDtypeStruct((n_p, f_out_p), jnp.float32),
        grid_spec=pltpu.PrefetchScalarGridSpec(
            num_scalar_prefetch=0,
            grid=grid,
            in_specs=[
                pl.BlockSpec((tm, tk), lambda i, k: (i, k)),          # adj tile
                pl.BlockSpec((tk, f_in), lambda i, k: (k, 0)),        # normed src feats
                pl.BlockSpec((tm, f_in), lambda i, k: (i, 0)),        # raw dst feats
                pl.BlockSpec((2 * f_in, f_out_p), lambda i, k: (0, 0)),  # packed weights
            ],
            out_specs=pl.BlockSpec((tm, f_out_p), lambda i, k: (i, 0)),
            scratch_shapes=[
                pltpu.VMEM((tm, f_in), jnp.float32),   # h_self accumulator
                pltpu.VMEM((tm, 1), jnp.float32),      # in-degree accumulator
            ],
        ),
        compiler_params=pltpu.CompilerParams(
            dimension_semantics=("parallel", "arbitrary"),
            vmem_limit_bytes=vmem_limit,
        ),
        cost_estimate=cost,
    )(adj_p, h_src_p, x_dst_p, w_packed)

    rst = out_p[:n, :f_out]
    if activation is not None:
        rst = activation(rst)
    return rst


def xavier_uniform(key, fan_in, fan_out):
    bound = (6.0 / (fan_in + fan_out)) ** 0.5
    return jax.random.uniform(key, (fan_in, fan_out), jnp.float32, -bound, bound)


def ngcf_conv_ref(adj, x, w_self, w_inter):
    """Pure-JAX reference mirroring the PyTorch/DGL forward (high precision)."""
    hp = jax.lax.Precision.HIGHEST
    deg_out = jnp.clip(jnp.sum(adj, axis=0), 1.0, None)
    h_src = x * (deg_out ** -0.5)[:, None]
    h_self = jnp.dot(adj, h_src, precision=hp)
    h_inter = h_self * x
    rst = (jnp.dot(h_self, w_self, precision=hp)
           + jnp.dot(h_inter, w_inter, precision=hp))
    deg_in = jnp.clip(jnp.sum(adj, axis=1), 1.0, None)
    return rst * (deg_in ** -0.5)[:, None]


if __name__ == "__main__":
    # Small but multi-tile: N=300 -> padded 384 -> grid (3, 3) with 128-tiles.
    N, F_IN, F_OUT = 300, 32, 32

    key = jax.random.PRNGKey(0)
    k_adj, k_feat, k_ws, k_wi = jax.random.split(key, 4)

    # Deterministic random graph (dense adjacency, ~30% edge density).
    adj = (jax.random.uniform(k_adj, (N, N)) < 0.3).astype(jnp.float32)
    feature = jax.random.normal(k_feat, (N, F_IN), jnp.float32)

    # Xavier-uniform parameter init (matches nn.init.xavier_uniform_).
    weight_self = xavier_uniform(k_ws, F_IN, F_OUT)
    weight_interaction = xavier_uniform(k_wi, F_IN, F_OUT)

    fwd = jax.jit(ngcf_conv)
    out = jax.block_until_ready(fwd(adj, feature, weight_self, weight_interaction))

    ref = ngcf_conv_ref(adj, feature, weight_self, weight_interaction)
    assert out.shape == (N, F_OUT)
    assert jnp.allclose(out, ref, atol=1e-3, rtol=1e-3), \
        float(jnp.max(jnp.abs(out - ref)))

    print("KERNEL_OK")
</pallas_src>

<mosaic_0001>
module attributes {stable_mosaic.version = 11 : i64} {
  func.func @ngcf_conv_kernel(%arg0: i32, %arg1: i32, %arg2: memref<128x128xbf16, #tpu.memory_space<vmem>>, %arg3: memref<128x32xf32, #tpu.memory_space<vmem>>, %arg4: memref<128x32xf32, #tpu.memory_space<vmem>>, %arg5: memref<64x128xf32, #tpu.memory_space<vmem>>, %arg6: memref<128x128xf32, #tpu.memory_space<vmem>>, %arg7: memref<128x32xf32, #tpu.memory_space<vmem>>, %arg8: memref<128x1xf32, #tpu.memory_space<vmem>>) attributes {dimension_semantics = [#tpu.dimension_semantics<parallel>, #tpu.dimension_semantics<arbitrary>], iteration_bounds = array<i64: 3, 3>, scalar_prefetch = 0 : i64, scratch_operands = 2 : i64, tpu.core_type = #tpu.core_type<tc>, window_params = [{transform_indices = @transform_0, window_bounds = array<i64: 128, 128>}, {transform_indices = @transform_1, window_bounds = array<i64: 128, 32>}, {transform_indices = @transform_2, window_bounds = array<i64: 128, 32>}, {pipeline_mode = #tpu.pipeline_mode<synchronous>, transform_indices = @transform_3, window_bounds = array<i64: 64, 128>}, {transform_indices = @transform_4, window_bounds = array<i64: 128, 128>}]} {
    %c0_i32 = arith.constant 0 : i32
    %0 = arith.cmpi eq, %arg1, %c0_i32 : i32
    %1 = arith.extui %0 : i1 to i32
    %c0_i32_0 = arith.constant 0 : i32
    %2 = arith.cmpi ne, %1, %c0_i32_0 : i32
    scf.if %2 {
      %cst_14 = arith.constant 0.000000e+00 : f32
      %18 = vector.broadcast %cst_14 : f32 to vector<128x32xf32>
      %c0_15 = arith.constant 0 : index
      %c0_16 = arith.constant 0 : index
      %19 = vector.load %arg7[%c0_15, %c0_16] : memref<128x32xf32, #tpu.memory_space<vmem>>, vector<128x32xf32>
      tpu.vector_store %arg7[%c0_15, %c0_16], %18 {strides = array<i32>} : memref<128x32xf32, #tpu.memory_space<vmem>>, vector<128x32xf32>,
      %cst_17 = arith.constant 0.000000e+00 : f32
      %20 = vector.broadcast %cst_17 : f32 to vector<128x1xf32>
      %c0_18 = arith.constant 0 : index
      %c0_19 = arith.constant 0 : index
      %21 = vector.load %arg8[%c0_18, %c0_19] : memref<128x1xf32, #tpu.memory_space<vmem>>, vector<128x1xf32>
      tpu.vector_store %arg8[%c0_18, %c0_19], %20 {strides = array<i32>} : memref<128x1xf32, #tpu.memory_space<vmem>>, vector<128x1xf32>,
    } else {
    }
    %c0 = arith.constant 0 : index
    %c0_1 = arith.constant 0 : index
    %3 = vector.load %arg2[%c0, %c0_1] : memref<128x128xbf16, #tpu.memory_space<vmem>>, vector<128x128xbf16>
    %4 = arith.extf %3 : vector<128x128xbf16> to vector<128x128xf32>
    %c0_2 = arith.constant 0 : index
    %c0_3 = arith.constant 0 : index
    %5 = vector.load %arg7[%c0_2, %c0_3] : memref<128x32xf32, #tpu.memory_space<vmem>>, vector<128x32xf32>
    %c0_4 = arith.constant 0 : index
    %c0_5 = arith.constant 0 : index
    %6 = vector.load %arg3[%c0_4, %c0_5] : memref<128x32xf32, #tpu.memory_space<vmem>>, vector<128x32xf32>
    %cst = arith.constant dense<0.000000e+00> : vector<128x32xf32>
    %7 = tpu.matmul %4, %6, %cst {dimension_numbers = #tpu.dot_dimension_numbers<[1], [0], [0], [1], [0, 0, 1, 1], [], []>} : vector<128x128xf32>, vector<128x32xf32>, vector<128x32xf32> -> vector<128x32xf32>
    %8 = arith.addf %5, %7 : vector<128x32xf32>
    %c0_6 = arith.constant 0 : index
    %c0_7 = arith.constant 0 : index
    %9 = vector.load %arg7[%c0_6, %c0_7] : memref<128x32xf32, #tpu.memory_space<vmem>>, vector<128x32xf32>
    tpu.vector_store %arg7[%c0_6, %c0_7], %8 {strides = array<i32>} : memref<128x32xf32, #tpu.memory_space<vmem>>, vector<128x32xf32>,
    %c0_8 = arith.constant 0 : index
    %c0_9 = arith.constant 0 : index
    %10 = vector.load %arg8[%c0_8, %c0_9] : memref<128x1xf32, #tpu.memory_space<vmem>>, vector<128x1xf32>
    %cst_10 = arith.constant dense<0.000000e+00> : vector<128xf32>
    %11 = vector.multi_reduction <add>, %4, %cst_10 [1] : vector<128x128xf32> to vector<128xf32>
    %12 = vector.shape_cast %11 : vector<128xf32> to vector<128x1xf32>
    %13 = arith.addf %10, %12 : vector<128x1xf32>
    %c0_11 = arith.constant 0 : index
    %c0_12 = arith.constant 0 : index
    %14 = vector.load %arg8[%c0_11, %c0_12] : memref<128x1xf32, #tpu.memory_space<vmem>>, vector<128x1xf32>
    tpu.vector_store %arg8[%c0_11, %c0_12], %13 {strides = array<i32>} : memref<128x1xf32, #tpu.memory_space<vmem>>, vector<128x1xf32>,
    %c2_i32 = arith.constant 2 : i32
    %15 = arith.cmpi eq, %arg1, %c2_i32 : i32
    %16 = arith.extui %15 : i1 to i32
    %c0_i32_13 = arith.constant 0 : i32
    %17 = arith.cmpi ne, %16, %c0_i32_13 : i32
    scf.if %17 {
      %c0_14 = arith.constant 0 : index
      %c0_15 = arith.constant 0 : index
      %18 = vector.load %arg7[%c0_14, %c0_15] : memref<128x32xf32, #tpu.memory_space<vmem>>, vector<128x32xf32>
      %c0_16 = arith.constant 0 : index
      %c0_17 = arith.constant 0 : index
      %19 = vector.load %arg4[%c0_16, %c0_17] : memref<128x32xf32, #tpu.memory_space<vmem>>, vector<128x32xf32>
      %20 = arith.mulf %18, %19 : vector<128x32xf32>
      %c0_18 = arith.constant 0 : index
      %c0_19 = arith.constant 0 : index
      %21 = vector.load %arg5[%c0_18, %c0_19] : memref<64x128xf32, #tpu.memory_space<vmem>>, vector<32x128xf32>
      %cst_20 = arith.constant dense<0.000000e+00> : vector<128x128xf32>
      %22 = tpu.matmul %18, %21, %cst_20 {dimension_numbers = #tpu.dot_dimension_numbers<[1], [0], [0], [1], [0, 0, 1, 1], [], []>} : vector<128x32xf32>, vector<32x128xf32>, vector<128x128xf32> -> vector<128x128xf32>
      %c32 = arith.constant 32 : index
      %c0_21 = arith.constant 0 : index
      %23 = vector.load %arg5[%c32, %c0_21] : memref<64x128xf32, #tpu.memory_space<vmem>>, vector<32x128xf32>
      %cst_22 = arith.constant dense<0.000000e+00> : vector<128x128xf32>
      %24 = tpu.matmul %20, %23, %cst_22 {dimension_numbers = #tpu.dot_dimension_numbers<[1], [0], [0], [1], [0, 0, 1, 1], [], []>} : vector<128x32xf32>, vector<32x128xf32>, vector<128x128xf32> -> vector<128x128xf32>
      %25 = arith.addf %22, %24 : vector<128x128xf32>
      %c0_23 = arith.constant 0 : index
      %c0_24 = arith.constant 0 : index
      %26 = vector.load %arg8[%c0_23, %c0_24] : memref<128x1xf32, #tpu.memory_space<vmem>>, vector<128x1xf32>
      %cst_25 = arith.constant 1.000000e+00 : f32
      %27 = vector.broadcast %cst_25 : f32 to vector<128x1xf32>
      %28 = arith.maximumf %26, %27 : vector<128x1xf32>
      %29 = math.rsqrt %28 : vector<128x1xf32>
      %30 = vector.broadcast %29 : vector<128x1xf32> to vector<128x128xf32>
      %31 = arith.mulf %25, %30 : vector<128x128xf32>
      %c0_26 = arith.constant 0 : index
      %c0_27 = arith.constant 0 : index
      %32 = vector.load %arg6[%c0_26, %c0_27] : memref<128x128xf32, #tpu.memory_space<vmem>>, vector<128x128xf32>
      tpu.vector_store %arg6[%c0_26, %c0_27], %31 {strides = array<i32>} : memref<128x128xf32, #tpu.memory_space<vmem>>, vector<128x128xf32>,
    } else {
    }
    return
  }
  func.func @transform_0(%arg0: i32, %arg1: i32) -> (i32, i32) {
    %c0_i32 = arith.constant 0 : i32
    return %arg0, %arg1 : i32, i32
  }
  func.func @transform_1(%arg0: i32, %arg1: i32) -> (i32, i32) {
    %c0_i32 = arith.constant 0 : i32
    %c0_i32_0 = arith.constant 0 : i32
    return %arg1, %c0_i32 : i32, i32
  }
  func.func @transform_2(%arg0: i32, %arg1: i32) -> (i32, i32) {
    %c0_i32 = arith.constant 0 : i32
    %c0_i32_0 = arith.constant 0 : i32
    return %arg0, %c0_i32 : i32, i32
  }
  func.func @transform_3(%arg0: i32, %arg1: i32) -> (i32, i32) {
    %c0_i32 = arith.constant 0 : i32
    %c0_i32_0 = arith.constant 0 : i32
    %c0_i32_1 = arith.constant 0 : i32
    return %c0_i32, %c0_i32_0 : i32, i32
  }
  func.func @transform_4(%arg0: i32, %arg1: i32) -> (i32, i32) {
    %c0_i32 = arith.constant 0 : i32
    %c0_i32_0 = arith.constant 0 : i32
    return %arg0, %c0_i32 : i32, i32
  }
}

</mosaic_0001>

<llo_original>
// kernel: ngcf_conv.1
$region0: #{ngcf_conv.1}
  #allocation0 [shape = 'u32[]', space=smem, size = 0x4, offset = 0x4, fixed_abs, tag = 'smem constant byte address 0x4 - core index']
  #allocation1 [shape = 'u32[144,128]{1,0:T(1,128)}', space=vmem, size = 0x12000, scoped, tag = 'internal scratch']
  #allocation2 [shape = 'f32[128,32]{1,0:T(8,128)}', space=vmem, size = 0x10000, scoped, tag = 'scratch operand']
  #allocation3 [shape = 'f32[128,1]{1,0:T(8,128)}', space=vmem, size = 0x10000, scoped, tag = 'scratch operand']
  %s0 = inlined_call_operand.vmem [shape: bf16[384,384], index: 0, kind: input, shape index: {}]
  %s1 = inlined_call_operand.vmem [shape: f32[384,32], index: 1, kind: input, shape index: {}]
  %s2 = inlined_call_operand.vmem [shape: f32[384,32], index: 2, kind: input, shape index: {}]
  %s3 = inlined_call_operand.vmem [shape: f32[64,128], index: 3, kind: input, shape index: {}]
  %s4 = inlined_call_operand.vmem [shape: f32[384,128], index: 4, kind: output, shape index: {}]
  %s5 = sld [smem:[#allocation0]]
  $region98: #{ngcf_conv.1} parent=0
    _
  %s7 = ssub.s32 1, %s5
  %s8 = scalar_select 0, %s7, %s5
  $region1: #{ngcf_conv.1} parent=0
    #allocation4 [shape = 'u8[65536]{0}', space=vmem, size = 0x10000, scoped, tag = 'input window, operand 0']
    loop: start=0, step=1, limit=11
    $region2: #{ngcf_conv.1} parent=1 // loop_pre_header
      _
    $region3: #{ngcf_conv.1} parent=1 // loop_header
      %s10 = sphi 0, %s14
      %p11 = scmp.ge.s32.totalorder %s10, 11
      %s17 = sphi 0, %s29
      %s18 = sphi 0, %s25
      %s19 = sphi 0, %s17
      %s20 = sphi 0, %s18
      %s21 = sphi 0, %s19
      %s22 = sphi 0, %s20
      %s34 = sphi 0, %s36
      %s37 = sphi 0, %s34
      %s38 = sphi 0, %s37
      %s54 = sphi 0, %s38
      %s60 = sphi 0, %s62
      %s63 = sphi 0, %s60
      %s64 = sphi 0, %s63
      %s80 = sphi 0, %s64
      %s86 = sphi 0, %s88
      %s89 = sphi 0, %s86
      %s90 = sphi 0, %s89
      %s106 = sphi 0, %s90
      %s110 = sphi 0, %s110
      %s112 = sphi 0, %s110
      %s113 = sphi 0, %s112
      %s127 = sphi 0, %s113
      %s133 = sphi 0, %s135
      %s136 = sphi 0, %s133
      %s137 = sphi 0, %s136
      %s153 = sphi 0, %s137
    $region4: #{ngcf_conv.1} parent=1 // loop_header_branch
      %13 = sbr.rel (%p11) target = $region8
    $region5: #{ngcf_conv.1} parent=1 // loop_body
      %s15 = ssub.s32 %s10, 1
      %s16 = ssub.s32 %s10, 2
      %s23 = sadd.s32 1, %s18
      %p24 = scmp.ge.s32.totalorder %s23, 3
      %s25 = scalar_select %p24, 0, %s23
      %s26 = sadd.s32 1, %s17
      %s27 = scalar_select %p24, %s26, %s17
      %p28 = scmp.ge.s32.totalorder %s27, 3
      %s29 = scalar_select %p28, 0, %s27
      %s30 = ssub.s32 %s17, %s29
      %s31 = ssub.s32 %s18, %s25
      %s32 = sor.u32 %s30, %s31
      %p33 = scmp.eq.s32.totalorder %s32, 0
      %s35 = sadd.s32 %s34, 1
      %s36 = scalar_select %p33, %s34, %s35
      %p39 = pneg %p33
      %p40 = scmp.eq.s32.totalorder %s10, 8
      %p41 = por %p39, %p40
      %p42 = scmp.ne.s32.totalorder %s34, %s37
      %p43 = scmp.eq.s32.totalorder %s10, 0
      %p44 = por %p42, %p43
      %p45 = scmp.ne.s32.totalorder %s34, %s37
      %p46 = scmp.eq.s32.totalorder %s15, 8
      %p47 = por %p45, %p46
      %p48 = scmp.ne.s32.totalorder %s37, %s38
      %p49 = scmp.eq.s32.totalorder %s15, 0
      %p50 = por %p48, %p49
      %p51 = scmp.ne.s32.totalorder %s37, %s38
      %p52 = scmp.eq.s32.totalorder %s16, 8
      %p53 = por %p51, %p52
      %p55 = scmp.ne.s32.totalorder %s38, %s54
      %p56 = scmp.eq.s32.totalorder %s16, 0
      %p57 = por %p55, %p56
      %s58 = ssub.s32 %s18, %s25
      %p59 = scmp.eq.s32.totalorder %s58, 0
      %s61 = sadd.s32 %s60, 1
      %s62 = scalar_select %p59, %s60, %s61
      %p65 = pneg %p59
      %p66 = scmp.eq.s32.totalorder %s10, 8
      %p67 = por %p65, %p66
      %p68 = scmp.ne.s32.totalorder %s60, %s63
      %p69 = scmp.eq.s32.totalorder %s10, 0
      %p70 = por %p68, %p69
      %p71 = scmp.ne.s32.totalorder %s60, %s63
      %p72 = scmp.eq.s32.totalorder %s15, 8
      %p73 = por %p71, %p72
      %p74 = scmp.ne.s32.totalorder %s63, %s64
      %p75 = scmp.eq.s32.totalorder %s15, 0
      %p76 = por %p74, %p75
      %p77 = scmp.ne.s32.totalorder %s63, %s64
      %p78 = scmp.eq.s32.totalorder %s16, 8
      %p79 = por %p77, %p78
      %p81 = scmp.ne.s32.totalorder %s64, %s80
      %p82 = scmp.eq.s32.totalorder %s16, 0
      %p83 = por %p81, %p82
      %s84 = ssub.s32 %s17, %s29
      %p85 = scmp.eq.s32.totalorder %s84, 0
      %s87 = sadd.s32 %s86, 1
      %s88 = scalar_select %p85, %s86, %s87
      %p91 = pneg %p85
      %p92 = scmp.eq.s32.totalorder %s10, 8
      %p93 = por %p91, %p92
      %p94 = scmp.ne.s32.totalorder %s86, %s89
      %p95 = scmp.eq.s32.totalorder %s10, 0
      %p96 = por %p94, %p95
      %p97 = scmp.ne.s32.totalorder %s86, %s89
      %p98 = scmp.eq.s32.totalorder %s15, 8
      %p99 = por %p97, %p98
      %p100 = scmp.ne.s32.totalorder %s89, %s90
      %p101 = scmp.eq.s32.totalorder %s15, 0
      %p102 = por %p100, %p101
      %p103 = scmp.ne.s32.totalorder %s89, %s90
      %p104 = scmp.eq.s32.totalorder %s16, 8
      %p105 = por %p103, %p104
      %p107 = scmp.ne.s32.totalorder %s90, %s106
      %p108 = scmp.eq.s32.totalorder %s16, 0
      %p109 = por %p107, %p108
      %s111 = sadd.s32 %s110, 1
      %p114 = scmp.eq.s32.totalorder %s10, 8
      %p115 = scmp.ne.s32.totalorder %s110, %s112
      %p116 = scmp.eq.s32.totalorder %s10, 0
      %p117 = por %p115, %p116
      %p118 = scmp.ne.s32.totalorder %s110, %s112
      %p119 = scmp.eq.s32.totalorder %s15, 8
      %p120 = por %p118, %p119
      %p121 = scmp.ne.s32.totalorder %s112, %s113
      %p122 = scmp.eq.s32.totalorder %s15, 0
      %p123 = por %p121, %p122
      %p124 = scmp.ne.s32.totalorder %s112, %s113
      %p125 = scmp.eq.s32.totalorder %s16, 8
      %p126 = por %p124, %p125
      %p128 = scmp.ne.s32.totalorder %s113, %s127
      %p129 = scmp.eq.s32.totalorder %s16, 0
      %p130 = por %p128, %p129
      %s131 = ssub.s32 %s17, %s29
      %p132 = scmp.eq.s32.totalorder %s131, 0
      %s134 = sadd.s32 %s133, 1
      %s135 = scalar_select %p132, %s133, %s134
      %p138 = pneg %p132
      %p139 = scmp.eq.s32.totalorder %s10, 8
      %p140 = por %p138, %p139
      %p141 = scmp.ne.s32.totalorder %s133, %s136
      %p142 = scmp.eq.s32.totalorder %s10, 0
      %p143 = por %p141, %p142
      %p144 = scmp.ne.s32.totalorder %s133, %s136
      %p145 = scmp.eq.s32.totalorder %s15, 8
      %p146 = por %p144, %p145
      %p147 = scmp.ne.s32.totalorder %s136, %s137
      %p148 = scmp.eq.s32.totalorder %s15, 0
      %p149 = por %p147, %p148
      %p150 = scmp.ne.s32.totalorder %s136, %s137
      %p151 = scmp.eq.s32.totalorder %s16, 8
      %p152 = por %p150, %p151
      %p154 = scmp.ne.s32.totalorder %s137, %s153
      %p155 = scmp.eq.s32.totalorder %s16, 0
      %p156 = por %p154, %p155
      %p157 = scmp.le.s32.totalorder 1, %s10
      %p158 = scmp.lt.s32.totalorder %s10, 10
      %p159 = pnand %p157, %p158
      %p160 = pneg %p159
      // Predicated region
      $region9: #{ngcf_conv.1} parent=5 // pred_check
        _
      $region10: #{ngcf_conv.1} parent=5 // pred_check_branch
        %162 = sbr.rel (%p159) target = $region12
      $region11: #{ngcf_conv.1} parent=5 // pred_region
        %s163 = ssub.s32 %s10, 1
        // Predicated region
        $region13: #{ngcf_conv.1} parent=11 // pred_check
          %p164 = pneg %p123
        $region14: #{ngcf_conv.1} parent=11 // pred_check_branch
          %166 = sbr.rel (%p164) target = $region16
        $region15: #{ngcf_conv.1} parent=11 // pred_region
          _
        $region16: #{ngcf_conv.1} parent=11 // pred_fallthru
          _
      $region12: #{ngcf_conv.1} parent=5 // pred_fallthru
        _
      %p167 = scmp.lt.s32.totalorder %s10, 9
      // Predicated region
      $region17: #{ngcf_conv.1} parent=5 // pred_check
        %p168 = pneg %p167
      $region18: #{ngcf_conv.1} parent=5 // pred_check_branch
        %170 = sbr.rel (%p168) target = $region20
      $region19: #{ngcf_conv.1} parent=5 // pred_region
        // Predicated region
        $region21: #{ngcf_conv.1} parent=19 // pred_check
          %p171 = pneg %p44
        $region22: #{ngcf_conv.1} parent=19 // pred_check_branch
          %173 = sbr.rel (%p171) target = $region24
        $region23: #{ngcf_conv.1} parent=19 // pred_region
          %s174 = sand.u32 %s34, 1
          %s175 = sand.u32 %s34, 1
          %s176 = smul.addr %s175, 64
          %s177 = scalar_lea.vmem [#allocation4], %s176
          %s178 = smul.u32 16, %s17
          %s179 = smul.addr %s178, 3
          %s180 = sadd.s32 %s18, %s179
          %s181 = smul.addr %s180, 4
          %s182 = scalar_lea.vmem %s0, %s181
          // Predicated region
          $region25: #{ngcf_conv.1} parent=23 // pred_check
            _
          $region26: #{ngcf_conv.1} parent=23 // pred_check_branch
            %184 = sbr.rel (0) target = $region28
          $region27: #{ngcf_conv.1} parent=23 // pred_region
            // Predicated region
            $region29: #{ngcf_conv.1} parent=27 // pred_check
              _
            $region30: #{ngcf_conv.1} parent=27 // pred_check_branch
              %186 = sbr.rel target = $region32
            $region31: #{ngcf_conv.1} parent=27 // pred_region
              // Predicated region
              $region44: #{ngcf_conv.1} parent=31 // pred_check
                _
              $region45: #{ngcf_conv.1} parent=31 // pred_check_branch
                %232 = sbr.rel (0) target = $region47
              $region46: #{ngcf_conv.1} parent=31 // pred_region
                loop: start=0, step=1, limit=1
                $region48: #{ngcf_conv.1} parent=46 // loop_pre_header
                  _
                $region49: #{ngcf_conv.1} parent=46 // loop_header
                  %s234 = sphi 0, %s238
                  %p235 = scmp.ge.s32.totalorder %s234, 1
                  %s239 = sphi %s182, %s182
                  %s240 = sphi %s177, %s177
                $region50: #{ngcf_conv.1} parent=46 // loop_header_branch
                  %237 = sbr.rel (%p235) target = $region54
                $region51: #{ngcf_conv.1} parent=46 // loop_body
                  _
                $region52: #{ngcf_conv.1} parent=46 // loop_footer
                  %s238 = sadd.s32 1, %s234
                $region53: #{ngcf_conv.1} parent=46 // loop_footer_branch
                  %233 = sbr.rel target = $region49
                $region54: #{ngcf_conv.1} parent=46 // loop_exit
                  _
                %s242 = ssub.s32 16, 1
                loop: start=0, step=1, limit=1
                $region55: #{ngcf_conv.1} parent=46 // loop_pre_header
                  _
                $region56: #{ngcf_conv.1} parent=46 // loop_header
                  %s244 = sphi 0, %s248
                  %p245 = scmp.ge.s32.totalorder %s244, 1
                  %s249 = sphi %s182, %s182
                  %s250 = sphi %s177, %s177
                $region57: #{ngcf_conv.1} parent=46 // loop_header_branch
                  %247 = sbr.rel (%p245) target = $region61
                $region58: #{ngcf_conv.1} parent=46 // loop_body
                  %v251 = vld [vmem:[%s249] sm:%s242]
                  %252 = vst [vmem:[%s250] sm:%s242] %v251
                  %v253 = vld [vmem:[%s249 + $0xc] sm:%s242]
                  %254 = vst [vmem:[%s250 + $0x4] sm:%s242] %v253
                  %v255 = vld [vmem:[%s249 + $0x18] sm:%s242]
                  %256 = vst [vmem:[%s250 + $0x8] sm:%s242] %v255
                  %v257 = vld [vmem:[%s249 + $0x24] sm:%s242]
                  %258 = vst [vmem:[%s250 + $0xc] sm:%s242] %v257
                  %v259 = vld [vmem:[%s249 + $0x30] sm:%s242]
                  %260 = vst [vmem:[%s250 + $0x10] sm:%s242] %v259
                  %v261 = vld [vmem:[%s249 + $0x3c] sm:%s242]
                  %262 = vst [vmem:[%s250 + $0x14] sm:%s242] %v261
                  %v263 = vld [vmem:[%s249 + $0x48] sm:%s242]
                  %264 = vst [vmem:[%s250 + $0x18] sm:%s242] %v263
                  %v265 = vld [vmem:[%s249 + $0x54] sm:%s242]
                  %266 = vst [vmem:[%s250 + $0x1c] sm:%s242] %v265
                  %v267 = vld [vmem:[%s249 + $0x60] sm:%s242]
                  %268 = vst [vmem:[%s250 + $0x20] sm:%s242] %v267
                  %v269 = vld [vmem:[%s249 + $0x6c] sm:%s242]
                  %270 = vst [vmem:[%s250 + $0x24] sm:%s242] %v269
                  %v271 = vld [vmem:[%s249 + $0x78] sm:%s242]
                  %272 = vst [vmem:[%s250 + $0x28] sm:%s242] %v271
                  %v273 = vld [vmem:[%s249 + $0x84] sm:%s242]
                  %274 = vst [vmem:[%s250 + $0x2c] sm:%s242] %v273
                  %v275 = vld [vmem:[%s249 + $0x90] sm:%s242]
                  %276 = vst [vmem:[%s250 + $0x30] sm:%s242] %v275
                  %v277 = vld [vmem:[%s249 + $0x9c] sm:%s242]
                  %278 = vst [vmem:[%s250 + $0x34] sm:%s242] %v277
                  %v279 = vld [vmem:[%s249 + $0xa8] sm:%s242]
                  %280 = vst [vmem:[%s250 + $0x38] sm:%s242] %v279
                  %v281 = vld [vmem:[%s249 + $0xb4] sm:%s242]
                  %282 = vst [vmem:[%s250 + $0x3c] sm:%s242] %v281
                $region59: #{ngcf_conv.1} parent=46 // loop_footer
                  %s248 = sadd.s32 1, %s244
                $region60: #{ngcf_conv.1} parent=46 // loop_footer_branch
                  %243 = sbr.rel target = $region56
                $region61: #{ngcf_conv.1} parent=46 // loop_exit
                  _
              $region47: #{ngcf_conv.1} parent=31 // pred_fallthru
                _
            $region32: #{ngcf_conv.1} parent=27 // pred_fallthru
              _
            // Predicated region
            $region33: #{ngcf_conv.1} parent=27 // pred_check
              _
            $region34: #{ngcf_conv.1} parent=27 // pred_check_branch
              %188 = sbr.rel (0) target = $region36
            $region35: #{ngcf_conv.1} parent=27 // pred_region
              %s190 = ssub.s32 16, 1
              loop: start=0, step=1, limit=1
              $region37: #{ngcf_conv.1} parent=35 // loop_pre_header
                _
              $region38: #{ngcf_conv.1} parent=35 // loop_header
                %s192 = sphi 0, %s196
                %p193 = scmp.ge.s32.totalorder %s192, 1
                %s197 = sphi %s182, %s182
                %s198 = sphi %s177, %s177
              $region39: #{ngcf_conv.1} parent=35 // loop_header_branch
                %195 = sbr.rel (%p193) target = $region43
              $region40: #{ngcf_conv.1} parent=35 // loop_body
                %v199 = vld [vmem:[%s197] sm:%s190]
                %200 = vst [vmem:[%s198] sm:%s190] %v199
                %v201 = vld [vmem:[%s197 + $0xc] sm:%s190]
                %202 = vst [vmem:[%s198 + $0x4] sm:%s190] %v201
                %v203 = vld [vmem:[%s197 + $0x18] sm:%s190]
                %204 = vst [vmem:[%s198 + $0x8] sm:%s190] %v203
                %v205 = vld [vmem:[%s197 + $0x24] sm:%s190]
                %206 = vst [vmem:[%s198 + $0xc] sm:%s190] %v205
                %v207 = vld [vmem:[%s197 + $0x30] sm:%s190]
                %208 = vst [vmem:[%s198 + $0x10] sm:%s190] %v207
                %v209 = vld [vmem:[%s197 + $0x3c] sm:%s190]
                %210 = vst [vmem:[%s198 + $0x14] sm:%s190] %v209
                %v211 = vld [vmem:[%s197 + $0x48] sm:%s190]
                %212 = vst [vmem:[%s198 + $0x18] sm:%s190] %v211
                %v213 = vld [vmem:[%s197 + $0x54] sm:%s190]
                %214 = vst [vmem:[%s198 + $0x1c] sm:%s190] %v213
                %v215 = vld [vmem:[%s197 + $0x60] sm:%s190]
                %216 = vst [vmem:[%s198 + $0x20] sm:%s190] %v215
                %v217 = vld [vmem:[%s197 + $0x6c] sm:%s190]
                %218 = vst [vmem:[%s198 + $0x24] sm:%s190] %v217
                %v219 = vld [vmem:[%s197 + $0x78] sm:%s190]
                %220 = vst [vmem:[%s198 + $0x28] sm:%s190] %v219
                %v221 = vld [vmem:[%s197 + $0x84] sm:%s190]
                %222 = vst [vmem:[%s198 + $0x2c] sm:%s190] %v221
                %v223 = vld [vmem:[%s197 + $0x90] sm:%s190]
                %224 = vst [vmem:[%s198 + $0x30] sm:%s190] %v223
                %v225 = vld [vmem:[%s197 + $0x9c] sm:%s190]
                %226 = vst [vmem:[%s198 + $0x34] sm:%s190] %v225
                %v227 = vld [vmem:[%s197 + $0xa8] sm:%s190]
                %228 = vst [vmem:[%s198 + $0x38] sm:%s190] %v227
                %v229 = vld [vmem:[%s197 + $0xb4] sm:%s190]
                %230 = vst [vmem:[%s198 + $0x3c] sm:%s190] %v229
              $region41: #{ngcf_conv.1} parent=35 // loop_footer
                %s196 = sadd.s32 1, %s192
              $region42: #{ngcf_conv.1} parent=35 // loop_footer_branch
                %191 = sbr.rel target = $region38
              $region43: #{ngcf_conv.1} parent=35 // loop_exit
                _
            $region36: #{ngcf_conv.1} parent=27 // pred_fallthru
              _
          $region28: #{ngcf_conv.1} parent=23 // pred_fallthru
            _
          %283 = vnop
        $region24: #{ngcf_conv.1} parent=19 // pred_fallthru
          _
        // Predicated region
        $region62: #{ngcf_conv.1} parent=19 // pred_check
          %p284 = pneg %p70
        $region63: #{ngcf_conv.1} parent=19 // pred_check_branch
          %286 = sbr.rel (%p284) target = $region65
        $region64: #{ngcf_conv.1} parent=19 // pred_region
          %s287 = smul.u32 16, %s18
          %p288 = scmp.lt.s32.totalorder %s287, 47
          %s289 = scalar_select %p288, %s287, 47
          %s290 = smul.addr %s289, 8
          %s291 = scalar_lea.vmem %s1, %s290
          %s292 = smul.u32 16, %s18
        $region65: #{ngcf_conv.1} parent=19 // pred_fallthru
          _
        // Predicated region
        $region66: #{ngcf_conv.1} parent=19 // pred_check
          %p293 = pneg %p96
        $region67: #{ngcf_conv.1} parent=19 // pred_check_branch
          %295 = sbr.rel (%p293) target = $region69
        $region68: #{ngcf_conv.1} parent=19 // pred_region
          %s296 = smul.u32 16, %s17
          %p297 = scmp.lt.s32.totalorder %s296, 47
          %s298 = scalar_select %p297, %s296, 47
          %s299 = smul.addr %s298, 8
          %s300 = scalar_lea.vmem %s2, %s299
          %s301 = smul.u32 16, %s17
        $region69: #{ngcf_conv.1} parent=19 // pred_fallthru
          _
      $region20: #{ngcf_conv.1} parent=5 // pred_fallthru
        _
      %p302 = scmp.le.s32.totalorder 1, %s10
      %p303 = scmp.lt.s32.totalorder %s10, 10
      %p304 = pnand %p302, %p303
      %p305 = pneg %p304
      // Predicated region
      $region70: #{ngcf_conv.1} parent=5 // pred_check
        _
      $region71: #{ngcf_conv.1} parent=5 // pred_check_branch
        %307 = sbr.rel (%p304) target = $region73
      $region72: #{ngcf_conv.1} parent=5 // pred_region
        %s308 = ssub.s32 %s10, 1
        %s309 = sand.u32 %s37, 1
        %s310 = sand.u32 %s37, 1
        %s311 = smul.addr %s310, 64
        %s312 = scalar_lea.vmem [#allocation4], %s311
        // Predicated region
        $region74: #{ngcf_conv.1} parent=72 // pred_check
          %p313 = pneg %p50
        $region75: #{ngcf_conv.1} parent=72 // pred_check_branch
          %315 = sbr.rel (%p313) target = $region77
        $region76: #{ngcf_conv.1} parent=72 // pred_region
          _
        $region77: #{ngcf_conv.1} parent=72 // pred_fallthru
          _
        %s316 = sand.u32 %s37, 1
        %s317 = sand.u32 %s37, 1
        %s318 = smul.addr %s317, 64
        %s319 = scalar_lea.vmem [#allocation4], %s318
        %p320 = pneg %p50
        %p321 = pneg %p47
        %s322 = smul.u32 16, %s20
        %p323 = scmp.lt.s32.totalorder %s322, 47
        %s324 = scalar_select %p323, %s322, 47
        %s325 = smul.addr %s324, 8
        %s326 = scalar_lea.vmem %s1, %s325
        %p327 = pneg %p76
        %p328 = pneg %p73
        %s329 = smul.u32 16, %s19
        %p330 = scmp.lt.s32.totalorder %s329, 47
        %s331 = scalar_select %p330, %s329, 47
        %s332 = smul.addr %s331, 8
        %s333 = scalar_lea.vmem %s2, %s332
        %p334 = pneg %p102
        %p335 = pneg %p99
        %p336 = pneg %p123
        %p337 = pneg %p120
        %p338 = pneg %p149
        %p339 = pneg %p146
        %s340 = smul.u32 16, %s19
        %p341 = scmp.lt.s32.totalorder %s340, 47
        %s342 = scalar_select %p341, %s340, 47
        %s343 = smul.addr %s342, 8
        %s344 = scalar_lea.vmem %s4, %s343
        %s345 = smul.u32 16, %s19
        %s346 = smul.u32 16, %s20
        %p347 = scmp.lt.s32.totalorder %s346, 47
        %s348 = scalar_select %p347, %s346, 47
        %s349 = smul.addr %s348, 8
        %s350 = scalar_lea.vmem %s1, %s349
        %s351 = smul.u32 16, %s20
        %s352 = smul.u32 16, %s19
        %p353 = scmp.lt.s32.totalorder %s352, 47
        %s354 = scalar_select %p353, %s352, 47
        %s355 = smul.addr %s354, 8
        %s356 = scalar_lea.vmem %s2, %s355
        %s357 = smul.u32 16, %s19
        %s358 = smul.u32 16, %s19
        %p359 = scmp.lt.s32.totalorder %s358, 47
        %s360 = scalar_select %p359, %s358, 47
        %s361 = smul.addr %s360, 8
        %s362 = scalar_lea.vmem %s4, %s361
        %s363 = smul.u32 16, %s19
        %p364 = scmp.eq.s32.totalorder %s20, 0
        // Predicated region
        $region78: #{ngcf_conv.1} parent=72 // pred_check
          %p365 = pneg %p364
        $region79: #{ngcf_conv.1} parent=72 // pred_check_branch
          %367 = sbr.rel (%p365) target = $region81
        $region80: #{ngcf_conv.1} parent=72 // pred_region
          %vm368 = vcmask 261120
          %369 = vst.msk [vmem:[#allocation2] sm:$0xff] %vm368, 0.0
          %370 = vst.msk [vmem:[#allocation2 + $0x8] sm:$0xff] %vm368, 0.0
          %371 = vst.msk [vmem:[#allocation2 + $0x10] sm:$0xff] %vm368, 0.0
          %372 = vst.msk [vmem:[#allocation2 + $0x18] sm:$0xff] %vm368, 0.0
          %373 = vst.msk [vmem:[#allocation2 + $0x20] sm:$0xff] %vm368, 0.0
          %374 = vst.msk [vmem:[#allocation2 + $0x28] sm:$0xff] %vm368, 0.0
          %375 = vst.msk [vmem:[#allocation2 + $0x30] sm:$0xff] %vm368, 0.0
          %376 = vst.msk [vmem:[#allocation2 + $0x38] sm:$0xff] %vm368, 0.0
          %377 = vst.msk [vmem:[#allocation2 + $0x40] sm:$0xff] %vm368, 0.0
          %378 = vst.msk [vmem:[#allocation2 + $0x48] sm:$0xff] %vm368, 0.0
          %379 = vst.msk [vmem:[#allocation2 + $0x50] sm:$0xff] %vm368, 0.0
          %380 = vst.msk [vmem:[#allocation2 + $0x58] sm:$0xff] %vm368, 0.0
          %381 = vst.msk [vmem:[#allocation2 + $0x60] sm:$0xff] %vm368, 0.0
          %382 = vst.msk [vmem:[#allocation2 + $0x68] sm:$0xff] %vm368, 0.0
          %383 = vst.msk [vmem:[#allocation2 + $0x70] sm:$0xff] %vm368, 0.0
          %384 = vst.msk [vmem:[#allocation2 + $0x78] sm:$0xff] %vm368, 0.0
          %vm385 = vcmask 7168
          %386 = vst.msk [vmem:[#allocation3] sm:$0xff] %vm385, 0.0
          %387 = vst.msk [vmem:[#allocation3 + $0x8] sm:$0xff] %vm385, 0.0
          %388 = vst.msk [vmem:[#allocation3 + $0x10] sm:$0xff] %vm385, 0.0
          %389 = vst.msk [vmem:[#allocation3 + $0x18] sm:$0xff] %vm385, 0.0
          %390 = vst.msk [vmem:[#allocation3 + $0x20] sm:$0xff] %vm385, 0.0
          %391 = vst.msk [vmem:[#allocation3 + $0x28] sm:$0xff] %vm385, 0.0
          %392 = vst.msk [vmem:[#allocation3 + $0x30] sm:$0xff] %vm385, 0.0
          %393 = vst.msk [vmem:[#allocation3 + $0x38] sm:$0xff] %vm385, 0.0
          %394 = vst.msk [vmem:[#allocation3 + $0x40] sm:$0xff] %vm385, 0.0
          %395 = vst.msk [vmem:[#allocation3 + $0x48] sm:$0xff] %vm385, 0.0
          %396 = vst.msk [vmem:[#allocation3 + $0x50] sm:$0xff] %vm385, 0.0
          %397 = vst.msk [vmem:[#allocation3 + $0x58] sm:$0xff] %vm385, 0.0
          %398 = vst.msk [vmem:[#allocation3 + $0x60] sm:$0xff] %vm385, 0.0
          %399 = vst.msk [vmem:[#allocation3 + $0x68] sm:$0xff] %vm385, 0.0
          %400 = vst.msk [vmem:[#allocation3 + $0x70] sm:$0xff] %vm385, 0.0
          %401 = vst.msk [vmem:[#allocation3 + $0x78] sm:$0xff] %vm385, 0.0
        $region81: #{ngcf_conv.1} parent=72 // pred_fallthru
          _
        %v402 = vld [vmem:[%s312] sm:$0xf]
        %v403 = vld [vmem:[%s312 + $0x4] sm:$0xf]
        %v404 = vld [vmem:[%s312 + $0x8] sm:$0xf]
        %v405 = vld [vmem:[%s312 + $0xc] sm:$0xf]
        %v406 = vld [vmem:[%s312 + $0x10] sm:$0xf]
        %v407 = vld [vmem:[%s312 + $0x14] sm:$0xf]
        %v408 = vld [vmem:[%s312 + $0x18] sm:$0xf]
        %v409 = vld [vmem:[%s312 + $0x1c] sm:$0xf]
        %v410 = vld [vmem:[%s312 + $0x20] sm:$0xf]
        %v411 = vld [vmem:[%s312 + $0x24] sm:$0xf]
        %v412 = vld [vmem:[%s312 + $0x28] sm:$0xf]
        %v413 = vld [vmem:[%s312 + $0x2c] sm:$0xf]
        %v414 = vld [vmem:[%s312 + $0x30] sm:$0xf]
        %v415 = vld [vmem:[%s312 + $0x34] sm:$0xf]
        %v416 = vld [vmem:[%s312 + $0x38] sm:$0xf]
        %v417 = vld [vmem:[%s312 + $0x3c] sm:$0xf]
        %v418 = vunpack.c.l.bf16 %v402
        %v419 = vunpack.c.l.bf16 %v403
        %v420 = vunpack.c.l.bf16 %v404
        %v421 = vunpack.c.l.bf16 %v405
        %v422 = vunpack.c.l.bf16 %v406
        %v423 = vunpack.c.l.bf16 %v407
        %v424 = vunpack.c.l.bf16 %v408
        %v425 = vunpack.c.l.bf16 %v409
        %v426 = vunpack.c.l.bf16 %v410
        %v427 = vunpack.c.l.bf16 %v411
        %v428 = vunpack.c.l.bf16 %v412
        %v429 = vunpack.c.l.bf16 %v413
        %v430 = vunpack.c.l.bf16 %v414
        %v431 = vunpack.c.l.bf16 %v415
        %v432 = vunpack.c.l.bf16 %v416
        %v433 = vunpack.c.l.bf16 %v417
        %v434 = vld [vmem:[#allocation2] sm:$0xff]
        %v435 = vld [vmem:[#allocation2 + $0x8] sm:$0xff]
        %v436 = vld [vmem:[#allocation2 + $0x10] sm:$0xff]
        %v437 = vld [vmem:[#allocation2 + $0x18] sm:$0xff]
        %v438 = vld [vmem:[#allocation2 + $0x20] sm:$0xff]
        %v439 = vld [vmem:[#allocation2 + $0x28] sm:$0xff]
        %v440 = vld [vmem:[#allocation2 + $0x30] sm:$0xff]
        %v441 = vld [vmem:[#allocation2 + $0x38] sm:$0xff]
        %v442 = vld [vmem:[#allocation2 + $0x40] sm:$0xff]
        %v443 = vld [vmem:[#allocation2 + $0x48] sm:$0xff]
        %v444 = vld [vmem:[#allocation2 + $0x50] sm:$0xff]
        %v445 = vld [vmem:[#allocation2 + $0x58] sm:$0xff]
        %v446 = vld [vmem:[#allocation2 + $0x60] sm:$0xff]
        %v447 = vld [vmem:[#allocation2 + $0x68] sm:$0xff]
        %v448 = vld [vmem:[#allocation2 + $0x70] sm:$0xff]
        %v449 = vld [vmem:[#allocation2 + $0x78] sm:$0xff]
        %v450 = vld [vmem:[%s350] sm:$0xff]
        %v451 = vld [vmem:[%s350 + $0x8] sm:$0xff]
        %v452 = vld [vmem:[%s350 + $0x10] sm:$0xff]
        %v453 = vld [vmem:[%s350 + $0x18] sm:$0xff]
        %v454 = vld [vmem:[%s350 + $0x20] sm:$0xff]
        %v455 = vld [vmem:[%s350 + $0x28] sm:$0xff]
        %v456 = vld [vmem:[%s350 + $0x30] sm:$0xff]
        %v457 = vld [vmem:[%s350 + $0x38] sm:$0xff]
        %v458 = vld [vmem:[%s350 + $0x40] sm:$0xff]
        %v459 = vld [vmem:[%s350 + $0x48] sm:$0xff]
        %v460 = vld [vmem:[%s350 + $0x50] sm:$0xff]
        %v461 = vld [vmem:[%s350 + $0x58] sm:$0xff]
        %v462 = vld [vmem:[%s350 + $0x60] sm:$0xff]
        %v463 = vld [vmem:[%s350 + $0x68] sm:$0xff]
        %v464 = vld [vmem:[%s350 + $0x70] sm:$0xff]
        %v465 = vld [vmem:[%s350 + $0x78] sm:$0xff]
        %466 = vmatprep.subr.mxu0 0.0
        %467 = vmatpush1.msra.mxu0 %v465
        %468 = vmatprep.subr.mxu0 0.0
        %469 = vmatpush1.msra.mxu0 %v464
        %470 = vmatprep.subr.mxu0 0.0
        %471 = vmatpush1.msra.mxu0 %v463
        %472 = vmatprep.subr.mxu0 0.0
        %473 = vmatpush1.msra.mxu0 %v462
        %474 = vmatprep.subr.mxu0 0.0
        %475 = vmatpush1.msra.mxu0 %v461
        %476 = vmatprep.subr.mxu0 0.0
        %477 = vmatpush1.msra.mxu0 %v460
        %478 = vmatprep.subr.mxu0 0.0
        %479 = vmatpush1.msra.mxu0 %v459
        %480 = vmatprep.subr.mxu0 0.0
        %481 = vmatpush1.msra.mxu0 %v458
        %482 = vmatprep.subr.mxu0 0.0
        %483 = vmatpush1.msra.mxu0 %v457
        %484 = vmatprep.subr.mxu0 0.0
        %485 = vmatpush1.msra.mxu0 %v456
        %486 = vmatprep.subr.mxu0 0.0
        %487 = vmatpush1.msra.mxu0 %v455
        %488 = vmatprep.subr.mxu0 0.0
        %489 = vmatpush1.msra.mxu0 %v454
        %490 = vmatprep.subr.mxu0 0.0
        %491 = vmatpush1.msra.mxu0 %v453
        %492 = vmatprep.subr.mxu0 0.0
        %493 = vmatpush1.msra.mxu0 %v452
        %494 = vmatprep.subr.mxu0 0.0
        %495 = vmatpush1.msra.mxu0 %v451
        %496 = vmatprep.subr.mxu0 0.0
        %497 = vmatpush1.msra.mxu0 %v450
        %498 = vmatprep.subr.mxu0 0.0
        %499 = vmatpush2.msra.mxu0 0.0
        %500 = vmatprep.subr.mxu0 0.0
        %501 = vmatpush2.msra.mxu0 0.0
        %502 = vmatprep.subr.mxu0 0.0
        %503 = vmatpush2.msra.mxu0 0.0
        %504 = vmatprep.subr.mxu0 0.0
        %505 = vmatpush2.msra.mxu0 0.0
        %506 = vmatprep.subr.mxu0 0.0
        %507 = vmatpush2.msra.mxu0 0.0
        %508 = vmatprep.subr.mxu0 0.0
        %509 = vmatpush2.msra.mxu0 0.0
        %510 = vmatprep.subr.mxu0 0.0
        %511 = vmatpush2.msra.mxu0 0.0
        %512 = vmatprep.subr.mxu0 0.0
        %513 = vmatpush2.msra.mxu0 0.0
        %514 = vmatprep.subr.mxu0 0.0
        %515 = vmatpush2.msra.mxu0 0.0
        %516 = vmatprep.subr.mxu0 0.0
        %517 = vmatpush2.msra.mxu0 0.0
        %518 = vmatprep.subr.mxu0 0.0
        %519 = vmatpush2.msra.mxu0 0.0
        %520 = vmatprep.subr.mxu0 0.0
        %521 = vmatpush2.msra.mxu0 0.0
        %522 = vmatprep.subr.mxu0 0.0
        %523 = vmatpush2.msra.mxu0 0.0
        %524 = vmatprep.subr.mxu0 0.0
        %525 = vmatpush2.msra.mxu0 0.0
        %526 = vmatprep.subr.mxu0 0.0
        %527 = vmatpush2.msra.mxu0 0.0
        %528 = vmatprep.subr.mxu0 0.0
        %529 = vmatpush2.msra.mxu0 0.0
        %530 = vmatprep.mubr.f32.mxu0 0.0
        %531 = vmatmul.mubr.f32.gmra.mxu0 %v418
        %v532 = vpop.f32.mrf.mxu0
        %v533 = vadd.f32 0.0, %v532
        %v534 = vpop.f32.mrf.mxu0
        %535 = vmatprep.mubr.f32.mxu0 0.0
        %536 = vmatmul.mubr.f32.gmra.mxu0 %v419
        %v537 = vpop.f32.mrf.mxu0
        %v538 = vadd.f32 0.0, %v537
        %v539 = vpop.f32.mrf.mxu0
        %540 = vmatprep.mubr.f32.mxu0 0.0
        %541 = vmatmul.mubr.f32.gmra.mxu0 %v420
        %v542 = vpop.f32.mrf.mxu0
        %v543 = vadd.f32 0.0, %v542
        %v544 = vpop.f32.mrf.mxu0
        %545 = vmatprep.mubr.f32.mxu0 0.0
        %546 = vmatmul.mubr.f32.gmra.mxu0 %v421
        %v547 = vpop.f32.mrf.mxu0
        %v548 = vadd.f32 0.0, %v547
        %v549 = vpop.f32.mrf.mxu0
        %550 = vmatprep.mubr.f32.mxu0 0.0
        %551 = vmatmul.mubr.f32.gmra.mxu0 %v422
        %v552 = vpop.f32.mrf.mxu0
        %v553 = vadd.f32 0.0, %v552
        %v554 = vpop.f32.mrf.mxu0
        %555 = vmatprep.mubr.f32.mxu0 0.0
        %556 = vmatmul.mubr.f32.gmra.mxu0 %v423
        %v557 = vpop.f32.mrf.mxu0
        %v558 = vadd.f32 0.0, %v557
        %v559 = vpop.f32.mrf.mxu0
        %560 = vmatprep.mubr.f32.mxu0 0.0
        %561 = vmatmul.mubr.f32.gmra.mxu0 %v424
        %v562 = vpop.f32.mrf.mxu0
        %v563 = vadd.f32 0.0, %v562
        %v564 = vpop.f32.mrf.mxu0
        %565 = vmatprep.mubr.f32.mxu0 0.0
        %566 = vmatmul.mubr.f32.gmra.mxu0 %v425
        %v567 = vpop.f32.mrf.mxu0
        %v568 = vadd.f32 0.0, %v567
        %v569 = vpop.f32.mrf.mxu0
        %570 = vmatprep.mubr.f32.mxu0 0.0
        %571 = vmatmul.mubr.f32.gmra.mxu0 %v426
        %v572 = vpop.f32.mrf.mxu0
        %v573 = vadd.f32 0.0, %v572
        %v574 = vpop.f32.mrf.mxu0
        %575 = vmatprep.mubr.f32.mxu0 0.0
        %576 = vmatmul.mubr.f32.gmra.mxu0 %v427
        %v577 = vpop.f32.mrf.mxu0
        %v578 = vadd.f32 0.0, %v577
        %v579 = vpop.f32.mrf.mxu0
        %580 = vmatprep.mubr.f32.mxu0 0.0
        %581 = vmatmul.mubr.f32.gmra.mxu0 %v428
        %v582 = vpop.f32.mrf.mxu0
        %v583 = vadd.f32 0.0, %v582
        %v584 = vpop.f32.mrf.mxu0
        %585 = vmatprep.mubr.f32.mxu0 0.0
        %586 = vmatmul.mubr.f32.gmra.mxu0 %v429
        %v587 = vpop.f32.mrf.mxu0
        %v588 = vadd.f32 0.0, %v587
        %v589 = vpop.f32.mrf.mxu0
        %590 = vmatprep.mubr.f32.mxu0 0.0
        %591 = vmatmul.mubr.f32.gmra.mxu0 %v430
        %v592 = vpop.f32.mrf.mxu0
        %v593 = vadd.f32 0.0, %v592
        %v594 = vpop.f32.mrf.mxu0
        %595 = vmatprep.mubr.f32.mxu0 0.0
        %596 = vmatmul.mubr.f32.gmra.mxu0 %v431
        %v597 = vpop.f32.mrf.mxu0
        %v598 = vadd.f32 0.0, %v597
        %v599 = vpop.f32.mrf.mxu0
        %600 = vmatprep.mubr.f32.mxu0 0.0
        %601 = vmatmul.mubr.f32.gmra.mxu0 %v432
        %v602 = vpop.f32.mrf.mxu0
        %v603 = vadd.f32 0.0, %v602
        %v604 = vpop.f32.mrf.mxu0
        %605 = vmatprep.mubr.f32.mxu0 0.0
        %606 = vmatmul.mubr.f32.gmra.mxu0 %v433
        %v607 = vpop.f32.mrf.mxu0
        %v608 = vadd.f32 0.0, %v607
        %v609 = vpop.f32.mrf.mxu0
        %610 = vdwg.mxu0
        %v611 = vadd.f32 %v434, %v533
        %v612 = vadd.f32 %v435, %v538
        %v613 = vadd.f32 %v436, %v543
        %v614 = vadd.f32 %v437, %v548
        %v615 = vadd.f32 %v438, %v553
        %v616 = vadd.f32 %v439, %v558
        %v617 = vadd.f32 %v440, %v563
        %v618 = vadd.f32 %v441, %v568
        %v619 = vadd.f32 %v442, %v573
        %v620 = vadd.f32 %v443, %v578
        %v621 = vadd.f32 %v444, %v583
        %v622 = vadd.f32 %v445, %v588
        %v623 = vadd.f32 %v446, %v593
        %v624 = vadd.f32 %v447, %v598
        %v625 = vadd.f32 %v448, %v603
        %v626 = vadd.f32 %v449, %v608
        %vm627 = vcmask 261120
        %628 = vst.msk [vmem:[#allocation2] sm:$0xff] %vm627, %v611
        %629 = vst.msk [vmem:[#allocation2 + $0x8] sm:$0xff] %vm627, %v612
        %630 = vst.msk [vmem:[#allocation2 + $0x10] sm:$0xff] %vm627, %v613
        %631 = vst.msk [vmem:[#allocation2 + $0x18] sm:$0xff] %vm627, %v614
        %632 = vst.msk [vmem:[#allocation2 + $0x20] sm:$0xff] %vm627, %v615
        %633 = vst.msk [vmem:[#allocation2 + $0x28] sm:$0xff] %vm627, %v616
        %634 = vst.msk [vmem:[#allocation2 + $0x30] sm:$0xff] %vm627, %v617
        %635 = vst.msk [vmem:[#allocation2 + $0x38] sm:$0xff] %vm627, %v618
        %636 = vst.msk [vmem:[#allocation2 + $0x40] sm:$0xff] %vm627, %v619
        %637 = vst.msk [vmem:[#allocation2 + $0x48] sm:$0xff] %vm627, %v620
        %638 = vst.msk [vmem:[#allocation2 + $0x50] sm:$0xff] %vm627, %v621
        %639 = vst.msk [vmem:[#allocation2 + $0x58] sm:$0xff] %vm627, %v622
        %640 = vst.msk [vmem:[#allocation2 + $0x60] sm:$0xff] %vm627, %v623
        %641 = vst.msk [vmem:[#allocation2 + $0x68] sm:$0xff] %vm627, %v624
        %642 = vst.msk [vmem:[#allocation2 + $0x70] sm:$0xff] %vm627, %v625
        %643 = vst.msk [vmem:[#allocation2 + $0x78] sm:$0xff] %vm627, %v626
        %v644 = vld [vmem:[#allocation3] sm:$0xff]
        %v645 = vld [vmem:[#allocation3 + $0x8] sm:$0xff]
        %v646 = vld [vmem:[#allocation3 + $0x10] sm:$0xff]
        %v647 = vld [vmem:[#allocation3 + $0x18] sm:$0xff]
        %v648 = vld [vmem:[#allocation3 + $0x20] sm:$0xff]
        %v649 = vld [vmem:[#allocation3 + $0x28] sm:$0xff]
        %v650 = vld [vmem:[#allocation3 + $0x30] sm:$0xff]
        %v651 = vld [vmem:[#allocation3 + $0x38] sm:$0xff]
        %v652 = vld [vmem:[#allocation3 + $0x40] sm:$0xff]
        %v653 = vld [vmem:[#allocation3 + $0x48] sm:$0xff]
        %v654 = vld [vmem:[#allocation3 + $0x50] sm:$0xff]
        %v655 = vld [vmem:[#allocation3 + $0x58] sm:$0xff]
        %v656 = vld [vmem:[#allocation3 + $0x60] sm:$0xff]
        %v657 = vld [vmem:[#allocation3 + $0x68] sm:$0xff]
        %v658 = vld [vmem:[#allocation3 + $0x70] sm:$0xff]
        %v659 = vld [vmem:[#allocation3 + $0x78] sm:$0xff]
        %660 = vadd.xlane.f32.xlu0 %v418
        %v661 = vpop.xlane.xlu0 %660
        %662 = vadd.xlane.f32.xlu0 %v419
        %v663 = vpop.xlane.xlu0 %662
        %664 = vadd.xlane.f32.xlu0 %v420
        %v665 = vpop.xlane.xlu0 %664
        %666 = vadd.xlane.f32.xlu0 %v421
        %v667 = vpop.xlane.xlu0 %666
        %668 = vadd.xlane.f32.xlu0 %v422
        %v669 = vpop.xlane.xlu0 %668
        %670 = vadd.xlane.f32.xlu0 %v423
        %v671 = vpop.xlane.xlu0 %670
        %672 = vadd.xlane.f32.xlu0 %v424
        %v673 = vpop.xlane.xlu0 %672
        %674 = vadd.xlane.f32.xlu0 %v425
        %v675 = vpop.xlane.xlu0 %674
        %676 = vadd.xlane.f32.xlu0 %v426
        %v677 = vpop.xlane.xlu0 %676
        %678 = vadd.xlane.f32.xlu0 %v427
        %v679 = vpop.xlane.xlu0 %678
        %680 = vadd.xlane.f32.xlu0 %v428
        %v681 = vpop.xlane.xlu0 %680
        %682 = vadd.xlane.f32.xlu0 %v429
        %v683 = vpop.xlane.xlu0 %682
        %684 = vadd.xlane.f32.xlu0 %v430
        %v685 = vpop.xlane.xlu0 %684
        %686 = vadd.xlane.f32.xlu0 %v431
        %v687 = vpop.xlane.xlu0 %686
        %688 = vadd.xlane.f32.xlu0 %v432
        %v689 = vpop.xlane.xlu0 %688
        %690 = vadd.xlane.f32.xlu0 %v433
        %v691 = vpop.xlane.xlu0 %690
        %v692 = vadd.f32 %v644, %v661
        %v693 = vadd.f32 %v645, %v663
        %v694 = vadd.f32 %v646, %v665
        %v695 = vadd.f32 %v647, %v667
        %v696 = vadd.f32 %v648, %v669
        %v697 = vadd.f32 %v649, %v671
        %v698 = vadd.f32 %v650, %v673
        %v699 = vadd.f32 %v651, %v675
        %v700 = vadd.f32 %v652, %v677
        %v701 = vadd.f32 %v653, %v679
        %v702 = vadd.f32 %v654, %v681
        %v703 = vadd.f32 %v655, %v683
        %v704 = vadd.f32 %v656, %v685
        %v705 = vadd.f32 %v657, %v687
        %v706 = vadd.f32 %v658, %v689
        %v707 = vadd.f32 %v659, %v691
        %vm708 = vcmask 7168
        %709 = vst.msk [vmem:[#allocation3] sm:$0xff] %vm708, %v692
        %710 = vst.msk [vmem:[#allocation3 + $0x8] sm:$0xff] %vm708, %v693
        %711 = vst.msk [vmem:[#allocation3 + $0x10] sm:$0xff] %vm708, %v694
        %712 = vst.msk [vmem:[#allocation3 + $0x18] sm:$0xff] %vm708, %v695
        %713 = vst.msk [vmem:[#allocation3 + $0x20] sm:$0xff] %vm708, %v696
        %714 = vst.msk [vmem:[#allocation3 + $0x28] sm:$0xff] %vm708, %v697
        %715 = vst.msk [vmem:[#allocation3 + $0x30] sm:$0xff] %vm708, %v698
        %716 = vst.msk [vmem:[#allocation3 + $0x38] sm:$0xff] %vm708, %v699
        %717 = vst.msk [vmem:[#allocation3 + $0x40] sm:$0xff] %vm708, %v700
        %718 = vst.msk [vmem:[#allocation3 + $0x48] sm:$0xff] %vm708, %v701
        %719 = vst.msk [vmem:[#allocation3 + $0x50] sm:$0xff] %vm708, %v702
        %720 = vst.msk [vmem:[#allocation3 + $0x58] sm:$0xff] %vm708, %v703
        %721 = vst.msk [vmem:[#allocation3 + $0x60] sm:$0xff] %vm708, %v704
        %722 = vst.msk [vmem:[#allocation3 + $0x68] sm:$0xff] %vm708, %v705
        %723 = vst.msk [vmem:[#allocation3 + $0x70] sm:$0xff] %vm708, %v706
        %724 = vst.msk [vmem:[#allocation3 + $0x78] sm:$0xff] %vm708, %v707
        %p725 = scmp.eq.s32.totalorder %s20, 2
        // Predicated region
        $region82: #{ngcf_conv.1} parent=72 // pred_check
          %p726 = pneg %p725
        $region83: #{ngcf_conv.1} parent=72 // pred_check_branch
          %728 = sbr.rel (%p726) target = $region85
        $region84: #{ngcf_conv.1} parent=72 // pred_region
          %v729 = vld [vmem:[#allocation2] sm:$0xff]
          %v730 = vld [vmem:[#allocation2 + $0x8] sm:$0xff]
          %v731 = vld [vmem:[#allocation2 + $0x10] sm:$0xff]
          %v732 = vld [vmem:[#allocation2 + $0x18] sm:$0xff]
          %v733 = vld [vmem:[#allocation2 + $0x20] sm:$0xff]
          %v734 = vld [vmem:[#allocation2 + $0x28] sm:$0xff]
          %v735 = vld [vmem:[#allocation2 + $0x30] sm:$0xff]
          %v736 = vld [vmem:[#allocation2 + $0x38] sm:$0xff]
          %v737 = vld [vmem:[#allocation2 + $0x40] sm:$0xff]
          %v738 = vld [vmem:[#allocation2 + $0x48] sm:$0xff]
          %v739 = vld [vmem:[#allocation2 + $0x50] sm:$0xff]
          %v740 = vld [vmem:[#allocation2 + $0x58] sm:$0xff]
          %v741 = vld [vmem:[#allocation2 + $0x60] sm:$0xff]
          %v742 = vld [vmem:[#allocation2 + $0x68] sm:$0xff]
          %v743 = vld [vmem:[#allocation2 + $0x70] sm:$0xff]
          %v744 = vld [vmem:[#allocation2 + $0x78] sm:$0xff]
          %v745 = vld [vmem:[%s356] sm:$0xff]
          %v746 = vld [vmem:[%s356 + $0x8] sm:$0xff]
          %v747 = vld [vmem:[%s356 + $0x10] sm:$0xff]
          %v748 = vld [vmem:[%s356 + $0x18] sm:$0xff]
          %v749 = vld [vmem:[%s356 + $0x20] sm:$0xff]
          %v750 = vld [vmem:[%s356 + $0x28] sm:$0xff]
          %v751 = vld [vmem:[%s356 + $0x30] sm:$0xff]
          %v752 = vld [vmem:[%s356 + $0x38] sm:$0xff]
          %v753 = vld [vmem:[%s356 + $0x40] sm:$0xff]
          %v754 = vld [vmem:[%s356 + $0x48] sm:$0xff]
          %v755 = vld [vmem:[%s356 + $0x50] sm:$0xff]
          %v756 = vld [vmem:[%s356 + $0x58] sm:$0xff]
          %v757 = vld [vmem:[%s356 + $0x60] sm:$0xff]
          %v758 = vld [vmem:[%s356 + $0x68] sm:$0xff]
          %v759 = vld [vmem:[%s356 + $0x70] sm:$0xff]
          %v760 = vld [vmem:[%s356 + $0x78] sm:$0xff]
          %v761 = vmul.f32 %v729, %v745
          %v762 = vmul.f32 %v730, %v746
          %v763 = vmul.f32 %v731, %v747
          %v764 = vmul.f32 %v732, %v748
          %v765 = vmul.f32 %v733, %v749
          %v766 = vmul.f32 %v734, %v750
          %v767 = vmul.f32 %v735, %v751
          %v768 = vmul.f32 %v736, %v752
          %v769 = vmul.f32 %v737, %v753
          %v770 = vmul.f32 %v738, %v754
          %v771 = vmul.f32 %v739, %v755
          %v772 = vmul.f32 %v740, %v756
          %v773 = vmul.f32 %v741, %v757
          %v774 = vmul.f32 %v742, %v758
          %v775 = vmul.f32 %v743, %v759
          %v776 = vmul.f32 %v744, %v760
          %v777 = vld [vmem:[%s3] sm:$0xff]
          %v778 = vld [vmem:[%s3 + $0x8] sm:$0xff]
          %v779 = vld [vmem:[%s3 + $0x10] sm:$0xff]
          %v780 = vld [vmem:[%s3 + $0x18] sm:$0xff]
          %v781 = vld [vmem:[%s3 + $0x20] sm:$0xff]
          %v782 = vld [vmem:[%s3 + $0x28] sm:$0xff]
          %v783 = vld [vmem:[%s3 + $0x30] sm:$0xff]
          %v784 = vld [vmem:[%s3 + $0x38] sm:$0xff]
          %v786 = vsel %vm627, %v761, 0
          %v789 = vsel %vm627, %v762, 0
          %v792 = vsel %vm627, %v763, 0
          %v795 = vsel %vm627, %v764, 0
          %v798 = vsel %vm627, %v765, 0
          %v801 = vsel %vm627, %v766, 0
          %v804 = vsel %vm627, %v767, 0
          %v807 = vsel %vm627, %v768, 0
          %v810 = vsel %vm627, %v769, 0
          %v813 = vsel %vm627, %v770, 0
          %v816 = vsel %vm627, %v771, 0
          %v819 = vsel %vm627, %v772, 0
          %v822 = vsel %vm627, %v773, 0
          %v825 = vsel %vm627, %v774, 0
          %v828 = vsel %vm627, %v775, 0
          %v831 = vsel %vm627, %v776, 0
          %833 = vmatprep.subr.mxu0 0.0
          %834 = vmatpush1.msra.mxu0 0.0
          %835 = vmatprep.subr.mxu0 0.0
          %836 = vmatpush1.msra.mxu0 0.0
          %837 = vmatprep.subr.mxu0 0.0
          %838 = vmatpush1.msra.mxu0 0.0
          %839 = vmatprep.subr.mxu0 0.0
          %840 = vmatpush1.msra.mxu0 0.0
          %841 = vmatprep.subr.mxu0 0.0
          %842 = vmatpush1.msra.mxu0 0.0
          %843 = vmatprep.subr.mxu0 0.0
          %844 = vmatpush1.msra.mxu0 0.0
          %845 = vmatprep.subr.mxu0 0.0
          %846 = vmatpush1.msra.mxu0 0.0
          %847 = vmatprep.subr.mxu0 0.0
          %848 = vmatpush1.msra.mxu0 0.0
          %849 = vmatprep.subr.mxu0 0.0
          %850 = vmatpush1.msra.mxu0 0.0
          %851 = vmatprep.subr.mxu0 0.0
          %852 = vmatpush1.msra.mxu0 0.0
          %853 = vmatprep.subr.mxu0 0.0
          %854 = vmatpush1.msra.mxu0 0.0
          %855 = vmatprep.subr.mxu0 0.0
          %856 = vmatpush1.msra.mxu0 0.0
          %857 = vmatprep.subr.mxu0 0.0
          %858 = vmatpush1.msra.mxu0 %v784
          %859 = vmatprep.subr.mxu0 0.0
          %860 = vmatpush1.msra.mxu0 %v783
          %861 = vmatprep.subr.mxu0 0.0
          %862 = vmatpush1.msra.mxu0 %v782
          %863 = vmatprep.subr.mxu0 0.0
          %864 = vmatpush1.msra.mxu0 %v781
          %865 = vmatprep.subr.mxu0 0.0
          %866 = vmatpush2.msra.mxu0 0.0
          %867 = vmatprep.subr.mxu0 0.0
          %868 = vmatpush2.msra.mxu0 0.0
          %869 = vmatprep.subr.mxu0 0.0
          %870 = vmatpush2.msra.mxu0 0.0
          %871 = vmatprep.subr.mxu0 0.0
          %872 = vmatpush2.msra.mxu0 0.0
          %873 = vmatprep.subr.mxu0 0.0
          %874 = vmatpush2.msra.mxu0 0.0
          %875 = vmatprep.subr.mxu0 0.0
          %876 = vmatpush2.msra.mxu0 0.0
          %877 = vmatprep.subr.mxu0 0.0
          %878 = vmatpush2.msra.mxu0 0.0
          %879 = vmatprep.subr.mxu0 0.0
          %880 = vmatpush2.msra.mxu0 0.0
          %881 = vmatprep.subr.mxu0 0.0
          %882 = vmatpush2.msra.mxu0 0.0
          %883 = vmatprep.subr.mxu0 0.0
          %884 = vmatpush2.msra.mxu0 0.0
          %885 = vmatprep.subr.mxu0 0.0
          %886 = vmatpush2.msra.mxu0 0.0
          %887 = vmatprep.subr.mxu0 0.0
          %888 = vmatpush2.msra.mxu0 0.0
          %889 = vmatprep.subr.mxu0 0.0
          %890 = vmatpush2.msra.mxu0 0.0
          %891 = vmatprep.subr.mxu0 0.0
          %892 = vmatpush2.msra.mxu0 0.0
          %893 = vmatprep.subr.mxu0 0.0
          %894 = vmatpush2.msra.mxu0 0.0
          %895 = vmatprep.subr.mxu0 0.0
          %896 = vmatpush2.msra.mxu0 0.0
          %897 = vmatprep.mubr.f32.mxu0 0.0
          %898 = vmatmul.mubr.f32.gmra.mxu0 %v786
          %v899 = vpop.f32.mrf.mxu0
          %v900 = vadd.f32 0.0, %v899
          %v901 = vpop.f32.mrf.mxu0
          %902 = vmatprep.mubr.f32.mxu0 0.0
          %903 = vmatmul.mubr.f32.gmra.mxu0 %v789
          %v904 = vpop.f32.mrf.mxu0
          %v905 = vadd.f32 0.0, %v904
          %v906 = vpop.f32.mrf.mxu0
          %907 = vmatprep.mubr.f32.mxu0 0.0
          %908 = vmatmul.mubr.f32.gmra.mxu0 %v792
          %v909 = vpop.f32.mrf.mxu0
          %v910 = vadd.f32 0.0, %v909
          %v911 = vpop.f32.mrf.mxu0
          %912 = vmatprep.mubr.f32.mxu0 0.0
          %913 = vmatmul.mubr.f32.gmra.mxu0 %v795
          %v914 = vpop.f32.mrf.mxu0
          %v915 = vadd.f32 0.0, %v914
          %v916 = vpop.f32.mrf.mxu0
          %917 = vmatprep.mubr.f32.mxu0 0.0
          %918 = vmatmul.mubr.f32.gmra.mxu0 %v798
          %v919 = vpop.f32.mrf.mxu0
          %v920 = vadd.f32 0.0, %v919
          %v921 = vpop.f32.mrf.mxu0
          %922 = vmatprep.mubr.f32.mxu0 0.0
          %923 = vmatmul.mubr.f32.gmra.mxu0 %v801
          %v924 = vpop.f32.mrf.mxu0
          %v925 = vadd.f32 0.0, %v924
          %v926 = vpop.f32.mrf.mxu0
          %927 = vmatprep.mubr.f32.mxu0 0.0
          %928 = vmatmul.mubr.f32.gmra.mxu0 %v804
          %v929 = vpop.f32.mrf.mxu0
          %v930 = vadd.f32 0.0, %v929
          %v931 = vpop.f32.mrf.mxu0
          %932 = vmatprep.mubr.f32.mxu0 0.0
          %933 = vmatmul.mubr.f32.gmra.mxu0 %v807
          %v934 = vpop.f32.mrf.mxu0
          %v935 = vadd.f32 0.0, %v934
          %v936 = vpop.f32.mrf.mxu0
          %937 = vmatprep.mubr.f32.mxu0 0.0
          %938 = vmatmul.mubr.f32.gmra.mxu0 %v810
          %v939 = vpop.f32.mrf.mxu0
          %v940 = vadd.f32 0.0, %v939
          %v941 = vpop.f32.mrf.mxu0
          %942 = vmatprep.mubr.f32.mxu0 0.0
          %943 = vmatmul.mubr.f32.gmra.mxu0 %v813
          %v944 = vpop.f32.mrf.mxu0
          %v945 = vadd.f32 0.0, %v944
          %v946 = vpop.f32.mrf.mxu0
          %947 = vmatprep.mubr.f32.mxu0 0.0
          %948 = vmatmul.mubr.f32.gmra.mxu0 %v816
          %v949 = vpop.f32.mrf.mxu0
          %v950 = vadd.f32 0.0, %v949
          %v951 = vpop.f32.mrf.mxu0
          %952 = vmatprep.mubr.f32.mxu0 0.0
          %953 = vmatmul.mubr.f32.gmra.mxu0 %v819
          %v954 = vpop.f32.mrf.mxu0
          %v955 = vadd.f32 0.0, %v954
          %v956 = vpop.f32.mrf.mxu0
          %957 = vmatprep.mubr.f32.mxu0 0.0
          %958 = vmatmul.mubr.f32.gmra.mxu0 %v822
          %v959 = vpop.f32.mrf.mxu0
          %v960 = vadd.f32 0.0, %v959
          %v961 = vpop.f32.mrf.mxu0
          %962 = vmatprep.mubr.f32.mxu0 0.0
          %963 = vmatmul.mubr.f32.gmra.mxu0 %v825
          %v964 = vpop.f32.mrf.mxu0
          %v965 = vadd.f32 0.0, %v964
          %v966 = vpop.f32.mrf.mxu0
          %967 = vmatprep.mubr.f32.mxu0 0.0
          %968 = vmatmul.mubr.f32.gmra.mxu0 %v828
          %v969 = vpop.f32.mrf.mxu0
          %v970 = vadd.f32 0.0, %v969
          %v971 = vpop.f32.mrf.mxu0
          %972 = vmatprep.mubr.f32.mxu0 0.0
          %973 = vmatmul.mubr.f32.gmra.mxu0 %v831
          %v974 = vpop.f32.mrf.mxu0
          %v975 = vadd.f32 0.0, %v974
          %v976 = vpop.f32.mrf.mxu0
          %977 = vdwg.mxu0
          %v979 = vsel %vm627, %v729, 0
          %v982 = vsel %vm627, %v730, 0
          %v985 = vsel %vm627, %v731, 0
          %v988 = vsel %vm627, %v732, 0
          %v991 = vsel %vm627, %v733, 0
          %v994 = vsel %vm627, %v734, 0
          %v997 = vsel %vm627, %v735, 0
          %v1000 = vsel %vm627, %v736, 0
          %v1003 = vsel %vm627, %v737, 0
          %v1006 = vsel %vm627, %v738, 0
          %v1009 = vsel %vm627, %v739, 0
          %v1012 = vsel %vm627, %v740, 0
          %v1015 = vsel %vm627, %v741, 0
          %v1018 = vsel %vm627, %v742, 0
          %v1021 = vsel %vm627, %v743, 0
          %v1024 = vsel %vm627, %v744, 0
          %1026 = vmatprep.subr.mxu0 0.0
          %1027 = vmatpush1.msra.mxu0 0.0
          %1028 = vmatprep.subr.mxu0 0.0
          %1029 = vmatpush1.msra.mxu0 0.0
          %1030 = vmatprep.subr.mxu0 0.0
          %1031 = vmatpush1.msra.mxu0 0.0
          %1032 = vmatprep.subr.mxu0 0.0
          %1033 = vmatpush1.msra.mxu0 0.0
          %1034 = vmatprep.subr.mxu0 0.0
          %1035 = vmatpush1.msra.mxu0 0.0
          %1036 = vmatprep.subr.mxu0 0.0
          %1037 = vmatpush1.msra.mxu0 0.0
          %1038 = vmatprep.subr.mxu0 0.0
          %1039 = vmatpush1.msra.mxu0 0.0
          %1040 = vmatprep.subr.mxu0 0.0
          %1041 = vmatpush1.msra.mxu0 0.0
          %1042 = vmatprep.subr.mxu0 0.0
          %1043 = vmatpush1.msra.mxu0 0.0
          %1044 = vmatprep.subr.mxu0 0.0
          %1045 = vmatpush1.msra.mxu0 0.0
          %1046 = vmatprep.subr.mxu0 0.0
          %1047 = vmatpush1.msra.mxu0 0.0
          %1048 = vmatprep.subr.mxu0 0.0
          %1049 = vmatpush1.msra.mxu0 0.0
          %1050 = vmatprep.subr.mxu0 0.0
          %1051 = vmatpush1.msra.mxu0 %v780
          %1052 = vmatprep.subr.mxu0 0.0
          %1053 = vmatpush1.msra.mxu0 %v779
          %1054 = vmatprep.subr.mxu0 0.0
          %1055 = vmatpush1.msra.mxu0 %v778
          %1056 = vmatprep.subr.mxu0 0.0
          %1057 = vmatpush1.msra.mxu0 %v777
          %1058 = vmatprep.subr.mxu0 0.0
          %1059 = vmatpush2.msra.mxu0 0.0
          %1060 = vmatprep.subr.mxu0 0.0
          %1061 = vmatpush2.msra.mxu0 0.0
          %1062 = vmatprep.subr.mxu0 0.0
          %1063 = vmatpush2.msra.mxu0 0.0
          %1064 = vmatprep.subr.mxu0 0.0
          %1065 = vmatpush2.msra.mxu0 0.0
          %1066 = vmatprep.subr.mxu0 0.0
          %1067 = vmatpush2.msra.mxu0 0.0
          %1068 = vmatprep.subr.mxu0 0.0
          %1069 = vmatpush2.msra.mxu0 0.0
          %1070 = vmatprep.subr.mxu0 0.0
          %1071 = vmatpush2.msra.mxu0 0.0
          %1072 = vmatprep.subr.mxu0 0.0
          %1073 = vmatpush2.msra.mxu0 0.0
          %1074 = vmatprep.subr.mxu0 0.0
          %1075 = vmatpush2.msra.mxu0 0.0
          %1076 = vmatprep.subr.mxu0 0.0
          %1077 = vmatpush2.msra.mxu0 0.0
          %1078 = vmatprep.subr.mxu0 0.0
          %1079 = vmatpush2.msra.mxu0 0.0
          %1080 = vmatprep.subr.mxu0 0.0
          %1081 = vmatpush2.msra.mxu0 0.0
          %1082 = vmatprep.subr.mxu0 0.0
          %1083 = vmatpush2.msra.mxu0 0.0
          %1084 = vmatprep.subr.mxu0 0.0
          %1085 = vmatpush2.msra.mxu0 0.0
          %1086 = vmatprep.subr.mxu0 0.0
          %1087 = vmatpush2.msra.mxu0 0.0
          %1088 = vmatprep.subr.mxu0 0.0
          %1089 = vmatpush2.msra.mxu0 0.0
          %1090 = vmatprep.mubr.f32.mxu0 0.0
          %1091 = vmatmul.mubr.f32.gmra.mxu0 %v979
          %v1092 = vpop.f32.mrf.mxu0
          %v1093 = vadd.f32 %v900, %v1092
          %v1094 = vpop.f32.mrf.mxu0
          %1095 = vmatprep.mubr.f32.mxu0 0.0
          %1096 = vmatmul.mubr.f32.gmra.mxu0 %v982
          %v1097 = vpop.f32.mrf.mxu0
          %v1098 = vadd.f32 %v905, %v1097
          %v1099 = vpop.f32.mrf.mxu0
          %1100 = vmatprep.mubr.f32.mxu0 0.0
          %1101 = vmatmul.mubr.f32.gmra.mxu0 %v985
          %v1102 = vpop.f32.mrf.mxu0
          %v1103 = vadd.f32 %v910, %v1102
          %v1104 = vpop.f32.mrf.mxu0
          %1105 = vmatprep.mubr.f32.mxu0 0.0
          %1106 = vmatmul.mubr.f32.gmra.mxu0 %v988
          %v1107 = vpop.f32.mrf.mxu0
          %v1108 = vadd.f32 %v915, %v1107
          %v1109 = vpop.f32.mrf.mxu0
          %1110 = vmatprep.mubr.f32.mxu0 0.0
          %1111 = vmatmul.mubr.f32.gmra.mxu0 %v991
          %v1112 = vpop.f32.mrf.mxu0
          %v1113 = vadd.f32 %v920, %v1112
          %v1114 = vpop.f32.mrf.mxu0
          %1115 = vmatprep.mubr.f32.mxu0 0.0
          %1116 = vmatmul.mubr.f32.gmra.mxu0 %v994
          %v1117 = vpop.f32.mrf.mxu0
          %v1118 = vadd.f32 %v925, %v1117
          %v1119 = vpop.f32.mrf.mxu0
          %1120 = vmatprep.mubr.f32.mxu0 0.0
          %1121 = vmatmul.mubr.f32.gmra.mxu0 %v997
          %v1122 = vpop.f32.mrf.mxu0
          %v1123 = vadd.f32 %v930, %v1122
          %v1124 = vpop.f32.mrf.mxu0
          %1125 = vmatprep.mubr.f32.mxu0 0.0
          %1126 = vmatmul.mubr.f32.gmra.mxu0 %v1000
          %v1127 = vpop.f32.mrf.mxu0
          %v1128 = vadd.f32 %v935, %v1127
          %v1129 = vpop.f32.mrf.mxu0
          %1130 = vmatprep.mubr.f32.mxu0 0.0
          %1131 = vmatmul.mubr.f32.gmra.mxu0 %v1003
          %v1132 = vpop.f32.mrf.mxu0
          %v1133 = vadd.f32 %v940, %v1132
          %v1134 = vpop.f32.mrf.mxu0
          %1135 = vmatprep.mubr.f32.mxu0 0.0
          %1136 = vmatmul.mubr.f32.gmra.mxu0 %v1006
          %v1137 = vpop.f32.mrf.mxu0
          %v1138 = vadd.f32 %v945, %v1137
          %v1139 = vpop.f32.mrf.mxu0
          %1140 = vmatprep.mubr.f32.mxu0 0.0
          %1141 = vmatmul.mubr.f32.gmra.mxu0 %v1009
          %v1142 = vpop.f32.mrf.mxu0
          %v1143 = vadd.f32 %v950, %v1142
          %v1144 = vpop.f32.mrf.mxu0
          %1145 = vmatprep.mubr.f32.mxu0 0.0
          %1146 = vmatmul.mubr.f32.gmra.mxu0 %v1012
          %v1147 = vpop.f32.mrf.mxu0
          %v1148 = vadd.f32 %v955, %v1147
          %v1149 = vpop.f32.mrf.mxu0
          %1150 = vmatprep.mubr.f32.mxu0 0.0
          %1151 = vmatmul.mubr.f32.gmra.mxu0 %v1015
          %v1152 = vpop.f32.mrf.mxu0
          %v1153 = vadd.f32 %v960, %v1152
          %v1154 = vpop.f32.mrf.mxu0
          %1155 = vmatprep.mubr.f32.mxu0 0.0
          %1156 = vmatmul.mubr.f32.gmra.mxu0 %v1018
          %v1157 = vpop.f32.mrf.mxu0
          %v1158 = vadd.f32 %v965, %v1157
          %v1159 = vpop.f32.mrf.mxu0
          %1160 = vmatprep.mubr.f32.mxu0 0.0
          %1161 = vmatmul.mubr.f32.gmra.mxu0 %v1021
          %v1162 = vpop.f32.mrf.mxu0
          %v1163 = vadd.f32 %v970, %v1162
          %v1164 = vpop.f32.mrf.mxu0
          %1165 = vmatprep.mubr.f32.mxu0 0.0
          %1166 = vmatmul.mubr.f32.gmra.mxu0 %v1024
          %v1167 = vpop.f32.mrf.mxu0
          %v1168 = vadd.f32 %v975, %v1167
          %v1169 = vpop.f32.mrf.mxu0
          %1170 = vdwg.mxu0
          %v1171 = vld [vmem:[#allocation3] sm:$0xff]
          %v1172 = vld [vmem:[#allocation3 + $0x8] sm:$0xff]
          %v1173 = vld [vmem:[#allocation3 + $0x10] sm:$0xff]
          %v1174 = vld [vmem:[#allocation3 + $0x18] sm:$0xff]
          %v1175 = vld [vmem:[#allocation3 + $0x20] sm:$0xff]
          %v1176 = vld [vmem:[#allocation3 + $0x28] sm:$0xff]
          %v1177 = vld [vmem:[#allocation3 + $0x30] sm:$0xff]
          %v1178 = vld [vmem:[#allocation3 + $0x38] sm:$0xff]
          %v1179 = vld [vmem:[#allocation3 + $0x40] sm:$0xff]
          %v1180 = vld [vmem:[#allocation3 + $0x48] sm:$0xff]
          %v1181 = vld [vmem:[#allocation3 + $0x50] sm:$0xff]
          %v1182 = vld [vmem:[#allocation3 + $0x58] sm:$0xff]
          %v1183 = vld [vmem:[#allocation3 + $0x60] sm:$0xff]
          %v1184 = vld [vmem:[#allocation3 + $0x68] sm:$0xff]
          %v1185 = vld [vmem:[#allocation3 + $0x70] sm:$0xff]
          %v1186 = vld [vmem:[#allocation3 + $0x78] sm:$0xff]
          %v1187 = vmax.f32 %v1171, 1.0
          %v1188 = vmax.f32 %v1172, 1.0
          %v1189 = vmax.f32 %v1173, 1.0
          %v1190 = vmax.f32 %v1174, 1.0
          %v1191 = vmax.f32 %v1175, 1.0
          %v1192 = vmax.f32 %v1176, 1.0
          %v1193 = vmax.f32 %v1177, 1.0
          %v1194 = vmax.f32 %v1178, 1.0
          %v1195 = vmax.f32 %v1179, 1.0
          %v1196 = vmax.f32 %v1180, 1.0
          %v1197 = vmax.f32 %v1181, 1.0
          %v1198 = vmax.f32 %v1182, 1.0
          %v1199 = vmax.f32 %v1183, 1.0
          %v1200 = vmax.f32 %v1184, 1.0
          %v1201 = vmax.f32 %v1185, 1.0
          %v1202 = vmax.f32 %v1186, 1.0
          %v1203 = vrsqrt.pop %v1187
          %v1204 = vrsqrt.pop %v1188
          %v1205 = vrsqrt.pop %v1189
          %v1206 = vrsqrt.pop %v1190
          %v1207 = vrsqrt.pop %v1191
          %v1208 = vrsqrt.pop %v1192
          %v1209 = vrsqrt.pop %v1193
          %v1210 = vrsqrt.pop %v1194
          %v1211 = vrsqrt.pop %v1195
          %v1212 = vrsqrt.pop %v1196
          %v1213 = vrsqrt.pop %v1197
          %v1214 = vrsqrt.pop %v1198
          %v1215 = vrsqrt.pop %v1199
          %v1216 = vrsqrt.pop %v1200
          %v1217 = vrsqrt.pop %v1201
          %v1218 = vrsqrt.pop %v1202
          %1220 = vset.pattern.permute.xlu0 0
          %1221 = vperm.xlu0 %1220, %v1203
          %v1222 = vpop.permute.xlu0 %1221
          %1225 = vset.pattern.permute.xlu0 0
          %1226 = vperm.xlu0 %1225, %v1204
          %v1227 = vpop.permute.xlu0 %1226
          %1230 = vset.pattern.permute.xlu0 0
          %1231 = vperm.xlu0 %1230, %v1205
          %v1232 = vpop.permute.xlu0 %1231
          %1235 = vset.pattern.permute.xlu0 0
          %1236 = vperm.xlu0 %1235, %v1206
          %v1237 = vpop.permute.xlu0 %1236
          %1240 = vset.pattern.permute.xlu0 0
          %1241 = vperm.xlu0 %1240, %v1207
          %v1242 = vpop.permute.xlu0 %1241
          %1245 = vset.pattern.permute.xlu0 0
          %1246 = vperm.xlu0 %1245, %v1208
          %v1247 = vpop.permute.xlu0 %1246
          %1250 = vset.pattern.permute.xlu0 0
          %1251 = vperm.xlu0 %1250, %v1209
          %v1252 = vpop.permute.xlu0 %1251
          %1255 = vset.pattern.permute.xlu0 0
          %1256 = vperm.xlu0 %1255, %v1210
          %v1257 = vpop.permute.xlu0 %1256
          %1260 = vset.pattern.permute.xlu0 0
          %1261 = vperm.xlu0 %1260, %v1211
          %v1262 = vpop.permute.xlu0 %1261
          %1265 = vset.pattern.permute.xlu0 0
          %1266 = vperm.xlu0 %1265, %v1212
          %v1267 = vpop.permute.xlu0 %1266
          %1270 = vset.pattern.permute.xlu0 0
          %1271 = vperm.xlu0 %1270, %v1213
          %v1272 = vpop.permute.xlu0 %1271
          %1275 = vset.pattern.permute.xlu0 0
          %1276 = vperm.xlu0 %1275, %v1214
          %v1277 = vpop.permute.xlu0 %1276
          %1280 = vset.pattern.permute.xlu0 0
          %1281 = vperm.xlu0 %1280, %v1215
          %v1282 = vpop.permute.xlu0 %1281
          %1285 = vset.pattern.permute.xlu0 0
          %1286 = vperm.xlu0 %1285, %v1216
          %v1287 = vpop.permute.xlu0 %1286
          %1290 = vset.pattern.permute.xlu0 0
          %1291 = vperm.xlu0 %1290, %v1217
          %v1292 = vpop.permute.xlu0 %1291
          %1295 = vset.pattern.permute.xlu0 0
          %1296 = vperm.xlu0 %1295, %v1218
          %v1297 = vpop.permute.xlu0 %1296
          %v1299 = vmul.f32 %v1093, %v1222
          %v1300 = vmul.f32 %v1098, %v1227
          %v1301 = vmul.f32 %v1103, %v1232
          %v1302 = vmul.f32 %v1108, %v1237
          %v1303 = vmul.f32 %v1113, %v1242
          %v1304 = vmul.f32 %v1118, %v1247
          %v1305 = vmul.f32 %v1123, %v1252
          %v1306 = vmul.f32 %v1128, %v1257
          %v1307 = vmul.f32 %v1133, %v1262
          %v1308 = vmul.f32 %v1138, %v1267
          %v1309 = vmul.f32 %v1143, %v1272
          %v1310 = vmul.f32 %v1148, %v1277
          %v1311 = vmul.f32 %v1153, %v1282
          %v1312 = vmul.f32 %v1158, %v1287
          %v1313 = vmul.f32 %v1163, %v1292
          %v1314 = vmul.f32 %v1168, %v1297
          %1315 = vst [vmem:[%s362] sm:$0xff] %v1299
          %1316 = vst [vmem:[%s362 + $0x8] sm:$0xff] %v1300
          %1317 = vst [vmem:[%s362 + $0x10] sm:$0xff] %v1301
          %1318 = vst [vmem:[%s362 + $0x18] sm:$0xff] %v1302
          %1319 = vst [vmem:[%s362 + $0x20] sm:$0xff] %v1303
          %1320 = vst [vmem:[%s362 + $0x28] sm:$0xff] %v1304
          %1321 = vst [vmem:[%s362 + $0x30] sm:$0xff] %v1305
          %1322 = vst [vmem:[%s362 + $0x38] sm:$0xff] %v1306
          %1323 = vst [vmem:[%s362 + $0x40] sm:$0xff] %v1307
          %1324 = vst [vmem:[%s362 + $0x48] sm:$0xff] %v1308
          %1325 = vst [vmem:[%s362 + $0x50] sm:$0xff] %v1309
          %1326 = vst [vmem:[%s362 + $0x58] sm:$0xff] %v1310
          %1327 = vst [vmem:[%s362 + $0x60] sm:$0xff] %v1311
          %1328 = vst [vmem:[%s362 + $0x68] sm:$0xff] %v1312
          %1329 = vst [vmem:[%s362 + $0x70] sm:$0xff] %v1313
          %1330 = vst [vmem:[%s362 + $0x78] sm:$0xff] %v1314
        $region85: #{ngcf_conv.1} parent=72 // pred_fallthru
          _
        %s1331 = smul.u32 16, %s19
        %p1332 = scmp.lt.s32.totalorder %s1331, 47
        %s1333 = scalar_select %p1332, %s1331, 47
        %s1334 = smul.addr %s1333, 8
        %s1335 = scalar_lea.vmem %s4, %s1334
        // Predicated region
        $region86: #{ngcf_conv.1} parent=72 // pred_check
          %p1336 = pneg %p146
        $region87: #{ngcf_conv.1} parent=72 // pred_check_branch
          %1338 = sbr.rel (%p1336) target = $region89
        $region88: #{ngcf_conv.1} parent=72 // pred_region
          %s1339 = smul.u32 16, %s19
        $region89: #{ngcf_conv.1} parent=72 // pred_fallthru
          _
      $region73: #{ngcf_conv.1} parent=5 // pred_fallthru
        _
      %p1340 = scmp.le.s32.totalorder 2, %s10
      // Predicated region
      $region90: #{ngcf_conv.1} parent=5 // pred_check
        %p1341 = pneg %p1340
      $region91: #{ngcf_conv.1} parent=5 // pred_check_branch
        %1343 = sbr.rel (%p1341) target = $region93
      $region92: #{ngcf_conv.1} parent=5 // pred_region
        %s1344 = ssub.s32 %s10, 2
        // Predicated region
        $region94: #{ngcf_conv.1} parent=92 // pred_check
          %p1345 = pneg %p152
        $region95: #{ngcf_conv.1} parent=92 // pred_check_branch
          %1347 = sbr.rel (%p1345) target = $region97
        $region96: #{ngcf_conv.1} parent=92 // pred_region
          %s1348 = smul.u32 16, %s21
          %p1349 = scmp.lt.s32.totalorder %s1348, 47
          %s1350 = scalar_select %p1349, %s1348, 47
          %s1351 = smul.addr %s1350, 8
          %s1352 = scalar_lea.vmem %s4, %s1351
        $region97: #{ngcf_conv.1} parent=92 // pred_fallthru
          _
      $region93: #{ngcf_conv.1} parent=5 // pred_fallthru
        _
    $region6: #{ngcf_conv.1} parent=1 // loop_footer
      %s14 = sadd.s32 1, %s10
    $region7: #{ngcf_conv.1} parent=1 // loop_footer_branch
      %9 = sbr.rel target = $region3
    $region8: #{ngcf_conv.1} parent=1 // loop_exit
      _

</llo_original>
